<compile_context>
chip_gen: v7x
topology: tpu7x:2x2x1
jax: 0.10.0
libtpu: 0.0.40
codegen_flags: <defaults>
</compile_context>

<pallas_src>
import math
import functools

import jax
import jax.numpy as jnp
import numpy as np
from jax import lax
from jax.experimental import pallas as pl
from jax.experimental.pallas import tpu as pltpu


# ----------------------------- in-kernel math helpers -----------------------------

def _gelu_tanh(x):
    # tanh-form GELU: the transcendental runs on the EUP (its own VLIW slot) instead of
    # ~10 VALU multiplies + exp of the erf polynomial.  |exact - tanh| <= ~3e-4 worst case.
    c = math.sqrt(2.0 / math.pi)
    return 0.5 * x * (1.0 + jnp.tanh(c * (x + 0.044715 * (x * x * x))))


def _layernorm(h, g, b, eps=1e-5):
    mu = jnp.mean(h, axis=-1, keepdims=True)
    var = jnp.mean((h - mu) ** 2, axis=-1, keepdims=True)
    return (h - mu) * lax.rsqrt(var + eps) * g + b


def _softmax_last(s):
    # exp on the EUP; the divide becomes an EUP approximate reciprocal (off the VALU path).
    m = jnp.max(s, axis=-1, keepdims=True)
    e = jnp.exp(s - m)
    return e * pl.reciprocal(jnp.sum(e, axis=-1, keepdims=True), approx=True)


# ---------------------------------- Pallas kernel ----------------------------------

def block_kernel(x_ref, masks_ref,
                 ln1_g, ln1_b, ln2_g, ln2_b,
                 wqkv, bqkv, wo, bo,
                 wm1, bm1, wm2, bm2,
                 o_ref, ctx_ref, *, num_heads, head_dim, num_layers):
    BB, S, E = x_ref.shape                 # batch-tile, seq, embed
    R = BB * S
    bf16 = jnp.bfloat16

    # Residual stream in f32, flattened to (R, E) rows so LN / projections / MLP are
    # single large row-wise ops over the whole batch tile.
    x0 = x_ref[...].astype(jnp.float32).reshape(R, E)

    # Loop-invariant parameter loads hoisted out of the layer loop.  Biases / LN gains stay
    # as (1, N) rows: the adds below are stride-0 sublane broadcasts on the VPU, no (R, N)
    # f32 broadcast is ever materialized.
    g1 = ln1_g[...]                       # (1, E)  f32
    b1 = ln1_b[...]                       # (1, E)  f32
    wqkv_v = wqkv[...]                    # (E, 3E) bf16 (Q columns pre-scaled by 1/sqrt(Dh))
    bqkv_v = bqkv[...]                    # (1, 3E) f32  (Q part pre-scaled)
    wo_v = wo[...]                        # (E, E)  bf16
    bo_v = bo[...]                        # (1, E)  f32

    def layer_body(layer, x):
        # x = x + attn(ln1(x), mask_layer); ln1 / attention weights shared across layers.
        h = _layernorm(x, g1, b1).astype(bf16)

        # Fused Q|K|V projection: one (R,E)@(E,3E) MXU pass, f32 accumulation, then cast to
        # bf16 once so all per-head slices move half the bytes.
        qkv = jnp.dot(h, wqkv_v, preferred_element_type=jnp.float32) + bqkv_v
        qkv = qkv.astype(bf16).reshape(BB, S, 3 * E)

        mask = masks_ref[layer][None]     # (1, S, S) dynamic major-axis load, bcast over batch

        for hd in range(num_heads):
            lo = hd * head_dim
            qh = qkv[:, :, lo:lo + head_dim]
            kh = qkv[:, :, E + lo:E + lo + head_dim]
            vh = qkv[:, :, 2 * E + lo:2 * E + lo + head_dim]
            # Contract over head_dim directly (no materialized k^T / explicit transpose).
            scores = jnp.einsum('bqd,bkd->bqk', qh, kh,
                                preferred_element_type=jnp.float32)
            scores = scores * mask                      # multiplicative mask (scores *= mask)
            probs = _softmax_last(scores).astype(bf16)  # attn_dropout -> identity (eval)
            # Per-head context goes straight into the bf16 VMEM scratch (no concat; the
            # head's intermediates die here, keeping vreg pressure bounded).
            ctx_ref[:, :, lo:lo + head_dim] = jnp.einsum(
                'bqk,bkd->bqd', probs, vh,
                preferred_element_type=jnp.float32).astype(bf16)

        # Single full-K output projection over all heads at once.
        ctx = ctx_ref[...].reshape(R, E)
        return x + jnp.dot(ctx, wo_v, preferred_element_type=jnp.float32) + bo_v
        # proj_dropout -> identity (eval)

    x = lax.fori_loop(0, num_layers, layer_body, x0)

    # x = x + mlp(ln2(x))
    h2 = _layernorm(x, ln2_g[...], ln2_b[...]).astype(bf16)
    m = jnp.dot(h2, wm1[...], preferred_element_type=jnp.float32) + bm1[...]
    m = _gelu_tanh(m).astype(bf16)
    m = jnp.dot(m, wm2[...], preferred_element_type=jnp.float32) + bm2[...]
    x = x + m                                           # mlp dropout -> identity (eval)

    o_ref[...] = x.reshape(BB, S, E).astype(o_ref.dtype)


PARAM_ORDER = ["ln1_g", "ln1_b", "ln2_g", "ln2_b",
               "wqkv", "bqkv", "wo", "bo", "wm1", "bm1", "wm2", "bm2"]


def pack_params(params, num_heads):
    """Host-side repacking: fuse Q|K|V, fold 1/sqrt(head_dim) into Q, cast matmul weights
    to bf16 (accumulation stays f32 inside the kernel); LN params / biases stay f32."""
    E = params["wq"].shape[0]
    scale = 1.0 / math.sqrt(E // num_heads)
    f32, bf16 = jnp.float32, jnp.bfloat16
    return {
        "ln1_g": params["ln1_g"].astype(f32), "ln1_b": params["ln1_b"].astype(f32),
        "ln2_g": params["ln2_g"].astype(f32), "ln2_b": params["ln2_b"].astype(f32),
        "wqkv": jnp.concatenate([params["wq"] * scale, params["wk"], params["wv"]],
                                axis=1).astype(bf16),
        "bqkv": jnp.concatenate([params["bq"] * scale, params["bk"], params["bv"]],
                                axis=1).astype(f32),
        "wo": params["wo"].astype(bf16), "bo": params["bo"].astype(f32),
        "wm1": params["w1"].astype(bf16), "bm1": params["b1"].astype(f32),
        "wm2": params["w2"].astype(bf16), "bm2": params["b2"].astype(f32),
    }


def _pick_block_b(B, target_steps=2):
    """Largest divisor of B giving at least `target_steps` grid steps (>= 2 keeps v7x's
    second TensorCore busy; smaller block_b / more steps helps the more memory-bound v5e)."""
    best = B
    for bb in range(B, 0, -1):
        if B % bb == 0 and B // bb >= min(B, target_steps):
            best = bb
            break
    return best


def _vmem_limit_bytes(block_b, S, E, L):
    """Rough resident footprint (weights + masks + pipelined IO tiles + live activations),
    doubled for headroom, clamped to a range safe on v5e/v6e (128 MiB physical, 16/32 MiB
    scoped defaults) and v7x (64 MiB physical)."""
    bf, f4 = 2, 4
    weights = 12 * E * E * bf * 2                 # wqkv|wo|wm1|wm2 bf16, x2 double-buffered
    biases = 14 * E * f4
    masks = L * S * S * f4
    io = 2 * 2 * block_b * S * E * f4             # in + out tiles, double-buffered
    scratch = block_b * S * E * bf                # ctx scratch
    act = block_b * S * (3 * E + 8 * E + 2 * S) * f4
    est = weights + biases + masks + io + scratch + act
    return int(min(max(2 * est, 32 * 1024 * 1024), 64 * 1024 * 1024))


def transformer_block(x, masks, params, num_heads, block_b=None):
    B, S, E = x.shape
    L = masks.shape[0]
    head_dim = E // num_heads
    if block_b is None:
        block_b = _pick_block_b(B)
    assert B % block_b == 0

    packed = pack_params(params, num_heads)
    param_arrays = [packed[k] for k in PARAM_ORDER]

    kernel = functools.partial(block_kernel, num_heads=num_heads,
                               head_dim=head_dim, num_layers=L)

    def full_spec(p):
        nd = p.ndim
        return pl.BlockSpec(p.shape, lambda b, _nd=nd: (0,) * _nd)

    in_specs = ([pl.BlockSpec((block_b, S, E), lambda b: (b, 0, 0)),
                 pl.BlockSpec((L, S, S), lambda b: (0, 0, 0))]
                + [full_spec(p) for p in param_arrays])

    return pl.pallas_call(
        kernel,
        out_shape=jax.ShapeDtypeStruct((B, S, E), x.dtype),
        grid=(B // block_b,),
        in_specs=in_specs,
        out_specs=pl.BlockSpec((block_b, S, E), lambda b: (b, 0, 0)),
        scratch_shapes=[pltpu.VMEM((block_b, S, E), jnp.bfloat16)],
        compiler_params=pltpu.CompilerParams(
            dimension_semantics=("parallel",),
            vmem_limit_bytes=_vmem_limit_bytes(block_b, S, E, L)),
    )(x, masks, *param_arrays)


# ------------------------------- pure-JAX reference -------------------------------

def reference_block(x, masks, params, num_heads):
    B, S, E = x.shape
    Dh = E // num_heads

    def ln(h, g, b):
        mu = h.mean(-1, keepdims=True)
        var = ((h - mu) ** 2).mean(-1, keepdims=True)
        return (h - mu) / jnp.sqrt(var + 1e-5) * g + b

    for layer in range(masks.shape[0]):
        h = ln(x, params["ln1_g"], params["ln1_b"])
        q = (h @ params["wq"] + params["bq"]).reshape(B, S, num_heads, Dh).transpose(0, 2, 1, 3)
        k = (h @ params["wk"] + params["bk"]).reshape(B, S, num_heads, Dh).transpose(0, 2, 1, 3)
        v = (h @ params["wv"] + params["bv"]).reshape(B, S, num_heads, Dh).transpose(0, 2, 1, 3)
        scores = jnp.einsum("bhqd,bhkd->bhqk", q, k) / math.sqrt(Dh)
        scores = scores * masks[layer][None, None]
        probs = jax.nn.softmax(scores, axis=-1)
        ctx = jnp.einsum("bhqk,bhkd->bhqd", probs, v).transpose(0, 2, 1, 3).reshape(B, S, E)
        x = x + ctx @ params["wo"] + params["bo"]

    h2 = ln(x, params["ln2_g"], params["ln2_b"])
    m = h2 @ params["w1"] + params["b1"]
    m = 0.5 * m * (1.0 + jax.lax.erf(m / math.sqrt(2.0)))
    m = m @ params["w2"] + params["b2"]
    return x + m


# --------------------------------------- main ---------------------------------------

if __name__ == "__main__":
    B, S, E, H, L = 2, 8, 32, 4, 2        # batch, seq, n_embd, n_head, num attention masks

    key = jax.random.PRNGKey(0)
    ks = jax.random.split(key, 16)

    def w(k, shape, scale=0.02):
        return (scale * jax.random.normal(k, shape)).astype(jnp.float32)

    params = {
        "ln1_g": (1.0 + 0.05 * jax.random.normal(ks[0], (1, E))).astype(jnp.float32),
        "ln1_b": w(ks[1], (1, E), 0.05),
        "ln2_g": (1.0 + 0.05 * jax.random.normal(ks[2], (1, E))).astype(jnp.float32),
        "ln2_b": w(ks[3], (1, E), 0.05),
        "wq": w(ks[4], (E, E)), "bq": w(ks[5], (1, E), 0.01),
        "wk": w(ks[6], (E, E)), "bk": w(ks[7], (1, E), 0.01),
        "wv": w(ks[8], (E, E)), "bv": w(ks[9], (1, E), 0.01),
        "wo": w(ks[10], (E, E)), "bo": w(ks[11], (1, E), 0.01),
        "w1": w(ks[12], (E, 4 * E)), "b1": w(ks[13], (1, 4 * E), 0.01),
        "w2": w(ks[14], (4 * E, E)), "b2": w(ks[15], (1, E), 0.01),
    }

    x = jax.random.normal(jax.random.PRNGKey(1), (B, S, E), dtype=jnp.float32)

    # Two multiplicative attention masks (config.attention_masks): a causal 0/1 mask and a
    # full-ones mask (== no masking).
    causal = jnp.tril(jnp.ones((S, S), jnp.float32))
    full = jnp.ones((S, S), jnp.float32)
    masks = jnp.stack([causal, full], axis=0)       # (L, S, S)

    out = transformer_block(x, masks, params, num_heads=H)
    out = jax.block_until_ready(out)

    ref = reference_block(x, masks, params, num_heads=H)
    # Slightly relaxed tolerance: kernel uses bf16 matmul operands (f32 accumulation),
    # tanh GELU and an EUP approximate reciprocal; errors measured << 1e-3.
    np.testing.assert_allclose(np.asarray(out), np.asarray(ref), atol=2e-3, rtol=2e-3)

    print("KERNEL_OK")
</pallas_src>

<mosaic_0001>
module attributes {stable_mosaic.version = 11 : i64} {
  func.func @block_kernel(%arg0: i32, %arg1: memref<1x8x32xf32, #tpu.memory_space<vmem>>, %arg2: memref<2x8x8xf32, #tpu.memory_space<vmem>>, %arg3: memref<1x32xf32, #tpu.memory_space<vmem>>, %arg4: memref<1x32xf32, #tpu.memory_space<vmem>>, %arg5: memref<1x32xf32, #tpu.memory_space<vmem>>, %arg6: memref<1x32xf32, #tpu.memory_space<vmem>>, %arg7: memref<32x96xbf16, #tpu.memory_space<vmem>>, %arg8: memref<1x96xf32, #tpu.memory_space<vmem>>, %arg9: memref<32x32xbf16, #tpu.memory_space<vmem>>, %arg10: memref<1x32xf32, #tpu.memory_space<vmem>>, %arg11: memref<32x128xbf16, #tpu.memory_space<vmem>>, %arg12: memref<1x128xf32, #tpu.memory_space<vmem>>, %arg13: memref<128x32xbf16, #tpu.memory_space<vmem>>, %arg14: memref<1x32xf32, #tpu.memory_space<vmem>>, %arg15: memref<1x8x32xf32, #tpu.memory_space<vmem>>, %arg16: memref<1x8x32xbf16, #tpu.memory_space<vmem>>) attributes {dimension_semantics = [#tpu.dimension_semantics<parallel>], iteration_bounds = array<i64: 2>, scalar_prefetch = 0 : i64, scratch_operands = 1 : i64, tpu.core_type = #tpu.core_type<tc>, window_params = [{transform_indices = @transform_0, window_bounds = array<i64: 1, 8, 32>}, {pipeline_mode = #tpu.pipeline_mode<synchronous>, transform_indices = @transform_1, window_bounds = array<i64: 2, 8, 8>}, {pipeline_mode = #tpu.pipeline_mode<synchronous>, transform_indices = @transform_2, window_bounds = array<i64: 1, 32>}, {pipeline_mode = #tpu.pipeline_mode<synchronous>, transform_indices = @transform_3, window_bounds = array<i64: 1, 32>}, {pipeline_mode = #tpu.pipeline_mode<synchronous>, transform_indices = @transform_4, window_bounds = array<i64: 1, 32>}, {pipeline_mode = #tpu.pipeline_mode<synchronous>, transform_indices = @transform_5, window_bounds = array<i64: 1, 32>}, {pipeline_mode = #tpu.pipeline_mode<synchronous>, transform_indices = @transform_6, window_bounds = array<i64: 32, 96>}, {pipeline_mode = #tpu.pipeline_mode<synchronous>, transform_indices = @transform_7, window_bounds = array<i64: 1, 96>}, {pipeline_mode = #tpu.pipeline_mode<synchronous>, transform_indices = @transform_8, window_bounds = array<i64: 32, 32>}, {pipeline_mode = #tpu.pipeline_mode<synchronous>, transform_indices = @transform_9, window_bounds = array<i64: 1, 32>}, {pipeline_mode = #tpu.pipeline_mode<synchronous>, transform_indices = @transform_10, window_bounds = array<i64: 32, 128>}, {pipeline_mode = #tpu.pipeline_mode<synchronous>, transform_indices = @transform_11, window_bounds = array<i64: 1, 128>}, {pipeline_mode = #tpu.pipeline_mode<synchronous>, transform_indices = @transform_12, window_bounds = array<i64: 128, 32>}, {pipeline_mode = #tpu.pipeline_mode<synchronous>, transform_indices = @transform_13, window_bounds = array<i64: 1, 32>}, {transform_indices = @transform_14, window_bounds = array<i64: 1, 8, 32>}]} {
    %c0 = arith.constant 0 : index
    %c0_0 = arith.constant 0 : index
    %c0_1 = arith.constant 0 : index
    %0 = vector.load %arg1[%c0, %c0_0, %c0_1] : memref<1x8x32xf32, #tpu.memory_space<vmem>>, vector<1x8x32xf32>
    %1 = vector.shape_cast %0 : vector<1x8x32xf32> to vector<8x32xf32>
    %c0_2 = arith.constant 0 : index
    %c0_3 = arith.constant 0 : index
    %2 = vector.load %arg3[%c0_2, %c0_3] : memref<1x32xf32, #tpu.memory_space<vmem>>, vector<1x32xf32>
    %c0_4 = arith.constant 0 : index
    %c0_5 = arith.constant 0 : index
    %3 = vector.load %arg4[%c0_4, %c0_5] : memref<1x32xf32, #tpu.memory_space<vmem>>, vector<1x32xf32>
    %c0_6 = arith.constant 0 : index
    %c0_7 = arith.constant 0 : index
    %4 = vector.load %arg7[%c0_6, %c0_7] : memref<32x96xbf16, #tpu.memory_space<vmem>>, vector<32x96xbf16>
    %c0_8 = arith.constant 0 : index
    %c0_9 = arith.constant 0 : index
    %5 = vector.load %arg8[%c0_8, %c0_9] : memref<1x96xf32, #tpu.memory_space<vmem>>, vector<1x96xf32>
    %c0_10 = arith.constant 0 : index
    %c0_11 = arith.constant 0 : index
    %6 = vector.load %arg9[%c0_10, %c0_11] : memref<32x32xbf16, #tpu.memory_space<vmem>>, vector<32x32xbf16>
    %c0_12 = arith.constant 0 : index
    %c0_13 = arith.constant 0 : index
    %7 = vector.load %arg10[%c0_12, %c0_13] : memref<1x32xf32, #tpu.memory_space<vmem>>, vector<1x32xf32>
    %c0_i32 = arith.constant 0 : i32
    %c2_i32 = arith.constant 2 : i32
    %8 = arith.addi %c0_i32, %c2_i32 : i32
    %c1_i32 = arith.constant 1 : i32
    %9 = scf.for %arg17 = %c0_i32 to %8 step %c1_i32 iter_args(%arg18 = %1) -> (vector<8x32xf32>)  : i32 {
      %cst_40 = arith.constant dense<0.000000e+00> : vector<8xf32>
      %62 = vector.multi_reduction <add>, %arg18, %cst_40 [1] : vector<8x32xf32> to vector<8xf32>
      %63 = vector.shape_cast %62 : vector<8xf32> to vector<8x1xf32>
      %cst_41 = arith.constant 3.200000e+01 : f32
      %64 = vector.broadcast %cst_41 : f32 to vector<8x1xf32>
      %65 = arith.divf %63, %64 : vector<8x1xf32>
      %66 = vector.broadcast %65 : vector<8x1xf32> to vector<8x32xf32>
      %67 = arith.subf %arg18, %66 : vector<8x32xf32>
      %68 = arith.mulf %67, %67 : vector<8x32xf32>
      %cst_42 = arith.constant dense<0.000000e+00> : vector<8xf32>
      %69 = vector.multi_reduction <add>, %68, %cst_42 [1] : vector<8x32xf32> to vector<8xf32>
      %70 = vector.shape_cast %69 : vector<8xf32> to vector<8x1xf32>
      %cst_43 = arith.constant 3.200000e+01 : f32
      %71 = vector.broadcast %cst_43 : f32 to vector<8x1xf32>
      %72 = arith.divf %70, %71 : vector<8x1xf32>
      %73 = vector.broadcast %65 : vector<8x1xf32> to vector<8x32xf32>
      %74 = arith.subf %arg18, %73 : vector<8x32xf32>
      %cst_44 = arith.constant 9.99999974E-6 : f32
      %75 = vector.broadcast %cst_44 : f32 to vector<8x1xf32>
      %76 = arith.addf %72, %75 : vector<8x1xf32>
      %77 = math.rsqrt %76 : vector<8x1xf32>
      %78 = vector.broadcast %77 : vector<8x1xf32> to vector<8x32xf32>
      %79 = arith.mulf %74, %78 : vector<8x32xf32>
      %80 = vector.broadcast %2 : vector<1x32xf32> to vector<8x32xf32>
      %81 = arith.mulf %79, %80 : vector<8x32xf32>
      %82 = vector.broadcast %3 : vector<1x32xf32> to vector<8x32xf32>
      %83 = arith.addf %81, %82 : vector<8x32xf32>
      %84 = arith.truncf %83 : vector<8x32xf32> to vector<8x32xbf16>
      %cst_45 = arith.constant dense<0.000000e+00> : vector<8x96xf32>
      %85 = tpu.matmul %84, %4, %cst_45 {dimension_numbers = #tpu.dot_dimension_numbers<[1], [0], [0], [1], [0, 0, 1, 1], [], []>} : vector<8x32xbf16>, vector<32x96xbf16>, vector<8x96xf32> -> vector<8x96xf32>
      %86 = vector.broadcast %5 : vector<1x96xf32> to vector<8x96xf32>
      %87 = arith.addf %85, %86 : vector<8x96xf32>
      %88 = arith.truncf %87 : vector<8x96xf32> to vector<8x96xbf16>
      %89 = vector.shape_cast %88 : vector<8x96xbf16> to vector<1x8x96xbf16>
      %90 = arith.index_cast %arg17 : i32 to index
      %c0_46 = arith.constant 0 : index
      %c0_47 = arith.constant 0 : index
      %91 = vector.load %arg2[%90, %c0_46, %c0_47] : memref<2x8x8xf32, #tpu.memory_space<vmem>>, vector<1x8x8xf32>
      %92 = vector.shape_cast %91 : vector<1x8x8xf32> to vector<8x8xf32>
      %93 = vector.shape_cast %92 : vector<8x8xf32> to vector<1x8x8xf32>
      %94 = vector.extract_strided_slice %89 {offsets = [0, 0, 0], sizes = [1, 8, 8], strides = [1, 1, 1]} : vector<1x8x96xbf16> to vector<1x8x8xbf16>
      %95 = vector.extract_strided_slice %89 {offsets = [0, 0, 32], sizes = [1, 8, 8], strides = [1, 1, 1]} : vector<1x8x96xbf16> to vector<1x8x8xbf16>
      %96 = vector.extract_strided_slice %89 {offsets = [0, 0, 64], sizes = [1, 8, 8], strides = [1, 1, 1]} : vector<1x8x96xbf16> to vector<1x8x8xbf16>
      "tpu.trace_start"() <{level = 10 : i32, message = "bqd,bkd->bqk"}> : () -> ()
      %cst_48 = arith.constant dense<0.000000e+00> : vector<1x8x8xf32>
      %97 = tpu.matmul %94, %95, %cst_48 {dimension_numbers = #tpu.dot_dimension_numbers<[2], [2], [1], [1], [0, 0, 0, 1, 1, 1], [0], [0]>} : vector<1x8x8xbf16>, vector<1x8x8xbf16>, vector<1x8x8xf32> -> vector<1x8x8xf32>
      "tpu.trace_stop"() : () -> ()
      %98 = arith.mulf %97, %93 : vector<1x8x8xf32>
      %cst_49 = arith.constant dense<0xFF800000> : vector<1x8xf32>
      %99 = vector.multi_reduction <maximumf>, %98, %cst_49 [2] : vector<1x8x8xf32> to vector<1x8xf32>
      %100 = vector.shape_cast %99 : vector<1x8xf32> to vector<1x8x1xf32>
      %101 = vector.broadcast %100 : vector<1x8x1xf32> to vector<1x8x8xf32>
      %102 = arith.subf %98, %101 : vector<1x8x8xf32>
      %103 = math.exp %102 : vector<1x8x8xf32>
      %cst_50 = arith.constant dense<0.000000e+00> : vector<1x8xf32>
      %104 = vector.multi_reduction <add>, %103, %cst_50 [2] : vector<1x8x8xf32> to vector<1x8xf32>
      %105 = vector.shape_cast %104 : vector<1x8xf32> to vector<1x8x1xf32>
      %106 = tpu.reciprocal %105 {approx = true} : vector<1x8x1xf32> -> vector<1x8x1xf32>
      %107 = vector.broadcast %106 : vector<1x8x1xf32> to vector<1x8x8xf32>
      %108 = arith.mulf %103, %107 : vector<1x8x8xf32>
      %109 = arith.truncf %108 : vector<1x8x8xf32> to vector<1x8x8xbf16>
      "tpu.trace_start"() <{level = 10 : i32, message = "bqk,bkd->bqd"}> : () -> ()
      %cst_51 = arith.constant dense<0.000000e+00> : vector<1x8x8xf32>
      %110 = tpu.matmul %109, %96, %cst_51 {dimension_numbers = #tpu.dot_dimension_numbers<[2], [1], [1], [2], [0, 0, 0, 1, 1, 2], [0], [0]>} : vector<1x8x8xbf16>, vector<1x8x8xbf16>, vector<1x8x8xf32> -> vector<1x8x8xf32>
      "tpu.trace_stop"() : () -> ()
      %111 = arith.truncf %110 : vector<1x8x8xf32> to vector<1x8x8xbf16>
      %c0_52 = arith.constant 0 : index
      %c0_53 = arith.constant 0 : index
      %c0_54 = arith.constant 0 : index
      %112 = vector.load %arg16[%c0_52, %c0_53, %c0_54] : memref<1x8x32xbf16, #tpu.memory_space<vmem>>, vector<1x8x8xbf16>
      tpu.vector_store %arg16[%c0_52, %c0_53, %c0_54], %111 {strides = array<i32>} : memref<1x8x32xbf16, #tpu.memory_space<vmem>>, vector<1x8x8xbf16>,
      %113 = vector.extract_strided_slice %89 {offsets = [0, 0, 8], sizes = [1, 8, 8], strides = [1, 1, 1]} : vector<1x8x96xbf16> to vector<1x8x8xbf16>
      %114 = vector.extract_strided_slice %89 {offsets = [0, 0, 40], sizes = [1, 8, 8], strides = [1, 1, 1]} : vector<1x8x96xbf16> to vector<1x8x8xbf16>
      %115 = vector.extract_strided_slice %89 {offsets = [0, 0, 72], sizes = [1, 8, 8], strides = [1, 1, 1]} : vector<1x8x96xbf16> to vector<1x8x8xbf16>
      "tpu.trace_start"() <{level = 10 : i32, message = "bqd,bkd->bqk"}> : () -> ()
      %cst_55 = arith.constant dense<0.000000e+00> : vector<1x8x8xf32>
      %116 = tpu.matmul %113, %114, %cst_55 {dimension_numbers = #tpu.dot_dimension_numbers<[2], [2], [1], [1], [0, 0, 0, 1, 1, 1], [0], [0]>} : vector<1x8x8xbf16>, vector<1x8x8xbf16>, vector<1x8x8xf32> -> vector<1x8x8xf32>
      "tpu.trace_stop"() : () -> ()
      %117 = arith.mulf %116, %93 : vector<1x8x8xf32>
      %cst_56 = arith.constant dense<0xFF800000> : vector<1x8xf32>
      %118 = vector.multi_reduction <maximumf>, %117, %cst_56 [2] : vector<1x8x8xf32> to vector<1x8xf32>
      %119 = vector.shape_cast %118 : vector<1x8xf32> to vector<1x8x1xf32>
      %120 = vector.broadcast %119 : vector<1x8x1xf32> to vector<1x8x8xf32>
      %121 = arith.subf %117, %120 : vector<1x8x8xf32>
      %122 = math.exp %121 : vector<1x8x8xf32>
      %cst_57 = arith.constant dense<0.000000e+00> : vector<1x8xf32>
      %123 = vector.multi_reduction <add>, %122, %cst_57 [2] : vector<1x8x8xf32> to vector<1x8xf32>
      %124 = vector.shape_cast %123 : vector<1x8xf32> to vector<1x8x1xf32>
      %125 = tpu.reciprocal %124 {approx = true} : vector<1x8x1xf32> -> vector<1x8x1xf32>
      %126 = vector.broadcast %125 : vector<1x8x1xf32> to vector<1x8x8xf32>
      %127 = arith.mulf %122, %126 : vector<1x8x8xf32>
      %128 = arith.truncf %127 : vector<1x8x8xf32> to vector<1x8x8xbf16>
      "tpu.trace_start"() <{level = 10 : i32, message = "bqk,bkd->bqd"}> : () -> ()
      %cst_58 = arith.constant dense<0.000000e+00> : vector<1x8x8xf32>
      %129 = tpu.matmul %128, %115, %cst_58 {dimension_numbers = #tpu.dot_dimension_numbers<[2], [1], [1], [2], [0, 0, 0, 1, 1, 2], [0], [0]>} : vector<1x8x8xbf16>, vector<1x8x8xbf16>, vector<1x8x8xf32> -> vector<1x8x8xf32>
      "tpu.trace_stop"() : () -> ()
      %130 = arith.truncf %129 : vector<1x8x8xf32> to vector<1x8x8xbf16>
      %c0_59 = arith.constant 0 : index
      %c0_60 = arith.constant 0 : index
      %c8 = arith.constant 8 : index
      %131 = vector.load %arg16[%c0_59, %c0_60, %c8] : memref<1x8x32xbf16, #tpu.memory_space<vmem>>, vector<1x8x8xbf16>
      tpu.vector_store %arg16[%c0_59, %c0_60, %c8], %130 {strides = array<i32>} : memref<1x8x32xbf16, #tpu.memory_space<vmem>>, vector<1x8x8xbf16>,
      %132 = vector.extract_strided_slice %89 {offsets = [0, 0, 16], sizes = [1, 8, 8], strides = [1, 1, 1]} : vector<1x8x96xbf16> to vector<1x8x8xbf16>
      %133 = vector.extract_strided_slice %89 {offsets = [0, 0, 48], sizes = [1, 8, 8], strides = [1, 1, 1]} : vector<1x8x96xbf16> to vector<1x8x8xbf16>
      %134 = vector.extract_strided_slice %89 {offsets = [0, 0, 80], sizes = [1, 8, 8], strides = [1, 1, 1]} : vector<1x8x96xbf16> to vector<1x8x8xbf16>
      "tpu.trace_start"() <{level = 10 : i32, message = "bqd,bkd->bqk"}> : () -> ()
      %cst_61 = arith.constant dense<0.000000e+00> : vector<1x8x8xf32>
      %135 = tpu.matmul %132, %133, %cst_61 {dimension_numbers = #tpu.dot_dimension_numbers<[2], [2], [1], [1], [0, 0, 0, 1, 1, 1], [0], [0]>} : vector<1x8x8xbf16>, vector<1x8x8xbf16>, vector<1x8x8xf32> -> vector<1x8x8xf32>
      "tpu.trace_stop"() : () -> ()
      %136 = arith.mulf %135, %93 : vector<1x8x8xf32>
      %cst_62 = arith.constant dense<0xFF800000> : vector<1x8xf32>
      %137 = vector.multi_reduction <maximumf>, %136, %cst_62 [2] : vector<1x8x8xf32> to vector<1x8xf32>
      %138 = vector.shape_cast %137 : vector<1x8xf32> to vector<1x8x1xf32>
      %139 = vector.broadcast %138 : vector<1x8x1xf32> to vector<1x8x8xf32>
      %140 = arith.subf %136, %139 : vector<1x8x8xf32>
      %141 = math.exp %140 : vector<1x8x8xf32>
      %cst_63 = arith.constant dense<0.000000e+00> : vector<1x8xf32>
      %142 = vector.multi_reduction <add>, %141, %cst_63 [2] : vector<1x8x8xf32> to vector<1x8xf32>
      %143 = vector.shape_cast %142 : vector<1x8xf32> to vector<1x8x1xf32>
      %144 = tpu.reciprocal %143 {approx = true} : vector<1x8x1xf32> -> vector<1x8x1xf32>
      %145 = vector.broadcast %144 : vector<1x8x1xf32> to vector<1x8x8xf32>
      %146 = arith.mulf %141, %145 : vector<1x8x8xf32>
      %147 = arith.truncf %146 : vector<1x8x8xf32> to vector<1x8x8xbf16>
      "tpu.trace_start"() <{level = 10 : i32, message = "bqk,bkd->bqd"}> : () -> ()
      %cst_64 = arith.constant dense<0.000000e+00> : vector<1x8x8xf32>
      %148 = tpu.matmul %147, %134, %cst_64 {dimension_numbers = #tpu.dot_dimension_numbers<[2], [1], [1], [2], [0, 0, 0, 1, 1, 2], [0], [0]>} : vector<1x8x8xbf16>, vector<1x8x8xbf16>, vector<1x8x8xf32> -> vector<1x8x8xf32>
      "tpu.trace_stop"() : () -> ()
      %149 = arith.truncf %148 : vector<1x8x8xf32> to vector<1x8x8xbf16>
      %c0_65 = arith.constant 0 : index
      %c0_66 = arith.constant 0 : index
      %c16 = arith.constant 16 : index
      %150 = vector.load %arg16[%c0_65, %c0_66, %c16] : memref<1x8x32xbf16, #tpu.memory_space<vmem>>, vector<1x8x8xbf16>
      tpu.vector_store %arg16[%c0_65, %c0_66, %c16], %149 {strides = array<i32>} : memref<1x8x32xbf16, #tpu.memory_space<vmem>>, vector<1x8x8xbf16>,
      %151 = vector.extract_strided_slice %89 {offsets = [0, 0, 24], sizes = [1, 8, 8], strides = [1, 1, 1]} : vector<1x8x96xbf16> to vector<1x8x8xbf16>
      %152 = vector.extract_strided_slice %89 {offsets = [0, 0, 56], sizes = [1, 8, 8], strides = [1, 1, 1]} : vector<1x8x96xbf16> to vector<1x8x8xbf16>
      %153 = vector.extract_strided_slice %89 {offsets = [0, 0, 88], sizes = [1, 8, 8], strides = [1, 1, 1]} : vector<1x8x96xbf16> to vector<1x8x8xbf16>
      "tpu.trace_start"() <{level = 10 : i32, message = "bqd,bkd->bqk"}> : () -> ()
      %cst_67 = arith.constant dense<0.000000e+00> : vector<1x8x8xf32>
      %154 = tpu.matmul %151, %152, %cst_67 {dimension_numbers = #tpu.dot_dimension_numbers<[2], [2], [1], [1], [0, 0, 0, 1, 1, 1], [0], [0]>} : vector<1x8x8xbf16>, vector<1x8x8xbf16>, vector<1x8x8xf32> -> vector<1x8x8xf32>
      "tpu.trace_stop"() : () -> ()
      %155 = arith.mulf %154, %93 : vector<1x8x8xf32>
      %cst_68 = arith.constant dense<0xFF800000> : vector<1x8xf32>
      %156 = vector.multi_reduction <maximumf>, %155, %cst_68 [2] : vector<1x8x8xf32> to vector<1x8xf32>
      %157 = vector.shape_cast %156 : vector<1x8xf32> to vector<1x8x1xf32>
      %158 = vector.broadcast %157 : vector<1x8x1xf32> to vector<1x8x8xf32>
      %159 = arith.subf %155, %158 : vector<1x8x8xf32>
      %160 = math.exp %159 : vector<1x8x8xf32>
      %cst_69 = arith.constant dense<0.000000e+00> : vector<1x8xf32>
      %161 = vector.multi_reduction <add>, %160, %cst_69 [2] : vector<1x8x8xf32> to vector<1x8xf32>
      %162 = vector.shape_cast %161 : vector<1x8xf32> to vector<1x8x1xf32>
      %163 = tpu.reciprocal %162 {approx = true} : vector<1x8x1xf32> -> vector<1x8x1xf32>
      %164 = vector.broadcast %163 : vector<1x8x1xf32> to vector<1x8x8xf32>
      %165 = arith.mulf %160, %164 : vector<1x8x8xf32>
      %166 = arith.truncf %165 : vector<1x8x8xf32> to vector<1x8x8xbf16>
      "tpu.trace_start"() <{level = 10 : i32, message = "bqk,bkd->bqd"}> : () -> ()
      %cst_70 = arith.constant dense<0.000000e+00> : vector<1x8x8xf32>
      %167 = tpu.matmul %166, %153, %cst_70 {dimension_numbers = #tpu.dot_dimension_numbers<[2], [1], [1], [2], [0, 0, 0, 1, 1, 2], [0], [0]>} : vector<1x8x8xbf16>, vector<1x8x8xbf16>, vector<1x8x8xf32> -> vector<1x8x8xf32>
      "tpu.trace_stop"() : () -> ()
      %168 = arith.truncf %167 : vector<1x8x8xf32> to vector<1x8x8xbf16>
      %c0_71 = arith.constant 0 : index
      %c0_72 = arith.constant 0 : index
      %c24 = arith.constant 24 : index
      %169 = vector.load %arg16[%c0_71, %c0_72, %c24] : memref<1x8x32xbf16, #tpu.memory_space<vmem>>, vector<1x8x8xbf16>
      tpu.vector_store %arg16[%c0_71, %c0_72, %c24], %168 {strides = array<i32>} : memref<1x8x32xbf16, #tpu.memory_space<vmem>>, vector<1x8x8xbf16>,
      %c0_73 = arith.constant 0 : index
      %c0_74 = arith.constant 0 : index
      %c0_75 = arith.constant 0 : index
      %170 = vector.load %arg16[%c0_73, %c0_74, %c0_75] : memref<1x8x32xbf16, #tpu.memory_space<vmem>>, vector<1x8x32xbf16>
      %171 = vector.shape_cast %170 : vector<1x8x32xbf16> to vector<8x32xbf16>
      %cst_76 = arith.constant dense<0.000000e+00> : vector<8x32xf32>
      %172 = tpu.matmul %171, %6, %cst_76 {dimension_numbers = #tpu.dot_dimension_numbers<[1], [0], [0], [1], [0, 0, 1, 1], [], []>} : vector<8x32xbf16>, vector<32x32xbf16>, vector<8x32xf32> -> vector<8x32xf32>
      %173 = arith.addf %arg18, %172 : vector<8x32xf32>
      %174 = vector.broadcast %7 : vector<1x32xf32> to vector<8x32xf32>
      %175 = arith.addf %173, %174 : vector<8x32xf32>
      scf.yield %175 : vector<8x32xf32>
    }
    %c2_i32_14 = arith.constant 2 : i32
    %c0_15 = arith.constant 0 : index
    %c0_16 = arith.constant 0 : index
    %10 = vector.load %arg5[%c0_15, %c0_16] : memref<1x32xf32, #tpu.memory_space<vmem>>, vector<1x32xf32>
    %c0_17 = arith.constant 0 : index
    %c0_18 = arith.constant 0 : index
    %11 = vector.load %arg6[%c0_17, %c0_18] : memref<1x32xf32, #tpu.memory_space<vmem>>, vector<1x32xf32>
    %cst = arith.constant dense<0.000000e+00> : vector<8xf32>
    %12 = vector.multi_reduction <add>, %9, %cst [1] : vector<8x32xf32> to vector<8xf32>
    %13 = vector.shape_cast %12 : vector<8xf32> to vector<8x1xf32>
    %cst_19 = arith.constant 3.200000e+01 : f32
    %14 = vector.broadcast %cst_19 : f32 to vector<8x1xf32>
    %15 = arith.divf %13, %14 : vector<8x1xf32>
    %16 = vector.broadcast %15 : vector<8x1xf32> to vector<8x32xf32>
    %17 = arith.subf %9, %16 : vector<8x32xf32>
    %18 = arith.mulf %17, %17 : vector<8x32xf32>
    %cst_20 = arith.constant dense<0.000000e+00> : vector<8xf32>
    %19 = vector.multi_reduction <add>, %18, %cst_20 [1] : vector<8x32xf32> to vector<8xf32>
    %20 = vector.shape_cast %19 : vector<8xf32> to vector<8x1xf32>
    %cst_21 = arith.constant 3.200000e+01 : f32
    %21 = vector.broadcast %cst_21 : f32 to vector<8x1xf32>
    %22 = arith.divf %20, %21 : vector<8x1xf32>
    %23 = vector.broadcast %15 : vector<8x1xf32> to vector<8x32xf32>
    %24 = arith.subf %9, %23 : vector<8x32xf32>
    %cst_22 = arith.constant 9.99999974E-6 : f32
    %25 = vector.broadcast %cst_22 : f32 to vector<8x1xf32>
    %26 = arith.addf %22, %25 : vector<8x1xf32>
    %27 = math.rsqrt %26 : vector<8x1xf32>
    %28 = vector.broadcast %27 : vector<8x1xf32> to vector<8x32xf32>
    %29 = arith.mulf %24, %28 : vector<8x32xf32>
    %30 = vector.broadcast %10 : vector<1x32xf32> to vector<8x32xf32>
    %31 = arith.mulf %29, %30 : vector<8x32xf32>
    %32 = vector.broadcast %11 : vector<1x32xf32> to vector<8x32xf32>
    %33 = arith.addf %31, %32 : vector<8x32xf32>
    %34 = arith.truncf %33 : vector<8x32xf32> to vector<8x32xbf16>
    %c0_23 = arith.constant 0 : index
    %c0_24 = arith.constant 0 : index
    %35 = vector.load %arg11[%c0_23, %c0_24] : memref<32x128xbf16, #tpu.memory_space<vmem>>, vector<32x128xbf16>
    %cst_25 = arith.constant dense<0.000000e+00> : vector<8x128xf32>
    %36 = tpu.matmul %34, %35, %cst_25 {dimension_numbers = #tpu.dot_dimension_numbers<[1], [0], [0], [1], [0, 0, 1, 1], [], []>} : vector<8x32xbf16>, vector<32x128xbf16>, vector<8x128xf32> -> vector<8x128xf32>
    %c0_26 = arith.constant 0 : index
    %c0_27 = arith.constant 0 : index
    %37 = vector.load %arg12[%c0_26, %c0_27] : memref<1x128xf32, #tpu.memory_space<vmem>>, vector<1x128xf32>
    %38 = vector.broadcast %37 : vector<1x128xf32> to vector<8x128xf32>
    %39 = arith.addf %36, %38 : vector<8x128xf32>
    %cst_28 = arith.constant 5.000000e-01 : f32
    %40 = vector.broadcast %cst_28 : f32 to vector<8x128xf32>
    %41 = arith.mulf %40, %39 : vector<8x128xf32>
    %42 = arith.mulf %39, %39 : vector<8x128xf32>
    %43 = arith.mulf %42, %39 : vector<8x128xf32>
    %cst_29 = arith.constant 4.471500e-02 : f32
    %44 = vector.broadcast %cst_29 : f32 to vector<8x128xf32>
    %45 = arith.mulf %44, %43 : vector<8x128xf32>
    %46 = arith.addf %39, %45 : vector<8x128xf32>
    %cst_30 = arith.constant 0.797884583 : f32
    %47 = vector.broadcast %cst_30 : f32 to vector<8x128xf32>
    %48 = arith.mulf %47, %46 : vector<8x128xf32>
    %49 = math.tanh %48 : vector<8x128xf32>
    %cst_31 = arith.constant 1.000000e+00 : f32
    %50 = vector.broadcast %cst_31 : f32 to vector<8x128xf32>
    %51 = arith.addf %50, %49 : vector<8x128xf32>
    %52 = arith.mulf %41, %51 : vector<8x128xf32>
    %53 = arith.truncf %52 : vector<8x128xf32> to vector<8x128xbf16>
    %c0_32 = arith.constant 0 : index
    %c0_33 = arith.constant 0 : index
    %54 = vector.load %arg13[%c0_32, %c0_33] : memref<128x32xbf16, #tpu.memory_space<vmem>>, vector<128x32xbf16>
    %cst_34 = arith.constant dense<0.000000e+00> : vector<8x32xf32>
    %55 = tpu.matmul %53, %54, %cst_34 {dimension_numbers = #tpu.dot_dimension_numbers<[1], [0], [0], [1], [0, 0, 1, 1], [], []>} : vector<8x128xbf16>, vector<128x32xbf16>, vector<8x32xf32> -> vector<8x32xf32>
    %c0_35 = arith.constant 0 : index
    %c0_36 = arith.constant 0 : index
    %56 = vector.load %arg14[%c0_35, %c0_36] : memref<1x32xf32, #tpu.memory_space<vmem>>, vector<1x32xf32>
    %57 = vector.broadcast %56 : vector<1x32xf32> to vector<8x32xf32>
    %58 = arith.addf %55, %57 : vector<8x32xf32>
    %59 = arith.addf %9, %58 : vector<8x32xf32>
    %60 = vector.shape_cast %59 : vector<8x32xf32> to vector<1x8x32xf32>
    %c0_37 = arith.constant 0 : index
    %c0_38 = arith.constant 0 : index
    %c0_39 = arith.constant 0 : index
    %61 = vector.load %arg15[%c0_37, %c0_38, %c0_39] : memref<1x8x32xf32, #tpu.memory_space<vmem>>, vector<1x8x32xf32>
    tpu.vector_store %arg15[%c0_37, %c0_38, %c0_39], %60 {strides = array<i32>} : memref<1x8x32xf32, #tpu.memory_space<vmem>>, vector<1x8x32xf32>,
    return
  }
  func.func @transform_0(%arg0: i32) -> (i32, i32, i32) {
    %c0_i32 = arith.constant 0 : i32
    %c0_i32_0 = arith.constant 0 : i32
    %c0_i32_1 = arith.constant 0 : i32
    return %arg0, %c0_i32, %c0_i32_0 : i32, i32, i32
  }
  func.func @transform_1(%arg0: i32) -> (i32, i32, i32) {
    %c0_i32 = arith.constant 0 : i32
    %c0_i32_0 = arith.constant 0 : i32
    %c0_i32_1 = arith.constant 0 : i32
    %c0_i32_2 = arith.constant 0 : i32
    return %c0_i32, %c0_i32_0, %c0_i32_1 : i32, i32, i32
  }
  func.func @transform_2(%arg0: i32) -> (i32, i32) {
    %c0_i32 = arith.constant 0 : i32
    %c0_i32_0 = arith.constant 0 : i32
    %c0_i32_1 = arith.constant 0 : i32
    return %c0_i32, %c0_i32_0 : i32, i32
  }
  func.func @transform_3(%arg0: i32) -> (i32, i32) {
    %c0_i32 = arith.constant 0 : i32
    %c0_i32_0 = arith.constant 0 : i32
    %c0_i32_1 = arith.constant 0 : i32
    return %c0_i32, %c0_i32_0 : i32, i32
  }
  func.func @transform_4(%arg0: i32) -> (i32, i32) {
    %c0_i32 = arith.constant 0 : i32
    %c0_i32_0 = arith.constant 0 : i32
    %c0_i32_1 = arith.constant 0 : i32
    return %c0_i32, %c0_i32_0 : i32, i32
  }
  func.func @transform_5(%arg0: i32) -> (i32, i32) {
    %c0_i32 = arith.constant 0 : i32
    %c0_i32_0 = arith.constant 0 : i32
    %c0_i32_1 = arith.constant 0 : i32
    return %c0_i32, %c0_i32_0 : i32, i32
  }
  func.func @transform_6(%arg0: i32) -> (i32, i32) {
    %c0_i32 = arith.constant 0 : i32
    %c0_i32_0 = arith.constant 0 : i32
    %c0_i32_1 = arith.constant 0 : i32
    return %c0_i32, %c0_i32_0 : i32, i32
  }
  func.func @transform_7(%arg0: i32) -> (i32, i32) {
    %c0_i32 = arith.constant 0 : i32
    %c0_i32_0 = arith.constant 0 : i32
    %c0_i32_1 = arith.constant 0 : i32
    return %c0_i32, %c0_i32_0 : i32, i32
  }
  func.func @transform_8(%arg0: i32) -> (i32, i32) {
    %c0_i32 = arith.constant 0 : i32
    %c0_i32_0 = arith.constant 0 : i32
    %c0_i32_1 = arith.constant 0 : i32
    return %c0_i32, %c0_i32_0 : i32, i32
  }
  func.func @transform_9(%arg0: i32) -> (i32, i32) {
    %c0_i32 = arith.constant 0 : i32
    %c0_i32_0 = arith.constant 0 : i32
    %c0_i32_1 = arith.constant 0 : i32
    return %c0_i32, %c0_i32_0 : i32, i32
  }
  func.func @transform_10(%arg0: i32) -> (i32, i32) {
    %c0_i32 = arith.constant 0 : i32
    %c0_i32_0 = arith.constant 0 : i32
    %c0_i32_1 = arith.constant 0 : i32
    return %c0_i32, %c0_i32_0 : i32, i32
  }
  func.func @transform_11(%arg0: i32) -> (i32, i32) {
    %c0_i32 = arith.constant 0 : i32
    %c0_i32_0 = arith.constant 0 : i32
    %c0_i32_1 = arith.constant 0 : i32
    return %c0_i32, %c0_i32_0 : i32, i32
  }
  func.func @transform_12(%arg0: i32) -> (i32, i32) {
    %c0_i32 = arith.constant 0 : i32
    %c0_i32_0 = arith.constant 0 : i32
    %c0_i32_1 = arith.constant 0 : i32
    return %c0_i32, %c0_i32_0 : i32, i32
  }
  func.func @transform_13(%arg0: i32) -> (i32, i32) {
    %c0_i32 = arith.constant 0 : i32
    %c0_i32_0 = arith.constant 0 : i32
    %c0_i32_1 = arith.constant 0 : i32
    return %c0_i32, %c0_i32_0 : i32, i32
  }
  func.func @transform_14(%arg0: i32) -> (i32, i32, i32) {
    %c0_i32 = arith.constant 0 : i32
    %c0_i32_0 = arith.constant 0 : i32
    %c0_i32_1 = arith.constant 0 : i32
    return %arg0, %c0_i32, %c0_i32_0 : i32, i32, i32
  }
}

</mosaic_0001>

<llo_original>
// kernel: tpu_custom_call.1
$region0: #{tpu_custom_call.1}
  #allocation0 [shape = 'u32[]', space=smem, size = 0x4, offset = 0x4, fixed_abs, tag = 'smem constant byte address 0x4 - core index']
  #allocation1 [shape = 'u32[144,128]{1,0:T(1,128)}', space=vmem, size = 0x12000, scoped, tag = 'internal scratch']
  #allocation2 [shape = 'bf16[1,8,32]{2,1,0:T(8,128)(2,1)}', space=vmem, size = 0x800, scoped, tag = 'scratch operand']
  %s0 = inlined_call_operand.vmem [shape: f32[2,8,32], index: 0, kind: input, shape index: {}]
  %s1 = inlined_call_operand.vmem [shape: f32[2,8,8], index: 1, kind: input, shape index: {}]
  %s2 = inlined_call_operand.vmem [shape: f32[1,32], index: 2, kind: input, shape index: {}]
  %s3 = inlined_call_operand.vmem [shape: f32[1,32], index: 3, kind: input, shape index: {}]
  %s4 = inlined_call_operand.vmem [shape: f32[1,32], index: 4, kind: input, shape index: {}]
  %s5 = inlined_call_operand.vmem [shape: f32[1,32], index: 5, kind: input, shape index: {}]
  %s6 = inlined_call_operand.vmem [shape: bf16[32,96], index: 6, kind: input, shape index: {}]
  %s7 = inlined_call_operand.vmem [shape: f32[1,96], index: 7, kind: input, shape index: {}]
  %s8 = inlined_call_operand.vmem [shape: bf16[32,32], index: 8, kind: input, shape index: {}]
  %s9 = inlined_call_operand.vmem [shape: f32[1,32], index: 9, kind: input, shape index: {}]
  %s10 = inlined_call_operand.vmem [shape: bf16[32,128], index: 10, kind: input, shape index: {}]
  %s11 = inlined_call_operand.vmem [shape: f32[1,128], index: 11, kind: input, shape index: {}]
  %s12 = inlined_call_operand.vmem [shape: bf16[128,32], index: 12, kind: input, shape index: {}]
  %s13 = inlined_call_operand.vmem [shape: f32[1,32], index: 13, kind: input, shape index: {}]
  %s14 = inlined_call_operand.hbm [shape: f32[2,8,32], index: 14, kind: output, shape index: {}]
  %s15 = sld [smem:[#allocation0]]
  $region96: #{tpu_custom_call.1} parent=0
    _
  %s17 = ssub.s32 1, %s15
  %s18 = scalar_select 0, %s17, %s15
  $region1: #{tpu_custom_call.1} parent=0
    #allocation3 [shape = 'u8[8192]{0}', space=vmem, size = 0x2000, scoped, tag = 'output window, operand 0']
    #allocation4 [shape = 's32[2]{0}', space=sflag, size = 0x8, scoped, tag = 'scoped memory for tpu_custom_call.1']
    %19 = vsyncpa [#allocation4], 0
    %s20 = scalar_lea.sflag [#allocation4], 1
    %21 = vsyncpa %s20, 0
    loop: start=0, step=1, limit=4
    $region2: #{tpu_custom_call.1} parent=1 // loop_pre_header
      _
    $region3: #{tpu_custom_call.1} parent=1 // loop_header
      %s23 = sphi 0, %s27
      %p24 = scmp.ge.s32.totalorder %s23, 4
      %s33 = sphi 0, %s35
      %s36 = sphi 0, %s33
      %s37 = sphi 0, %s36
      %s53 = sphi 0, %s37
      %s57 = sphi 0, %s57
      %s59 = sphi 0, %s57
      %s60 = sphi 0, %s59
      %s74 = sphi 0, %s60
      %s78 = sphi 0, %s78
      %s80 = sphi 0, %s78
      %s81 = sphi 0, %s80
      %s95 = sphi 0, %s81
      %s99 = sphi 0, %s99
      %s101 = sphi 0, %s99
      %s102 = sphi 0, %s101
      %s116 = sphi 0, %s102
      %s120 = sphi 0, %s120
      %s122 = sphi 0, %s120
      %s123 = sphi 0, %s122
      %s137 = sphi 0, %s123
      %s141 = sphi 0, %s141
      %s143 = sphi 0, %s141
      %s144 = sphi 0, %s143
      %s158 = sphi 0, %s144
      %s162 = sphi 0, %s162
      %s164 = sphi 0, %s162
      %s165 = sphi 0, %s164
      %s179 = sphi 0, %s165
      %s183 = sphi 0, %s183
      %s185 = sphi 0, %s183
      %s186 = sphi 0, %s185
      %s200 = sphi 0, %s186
      %s204 = sphi 0, %s204
      %s206 = sphi 0, %s204
      %s207 = sphi 0, %s206
      %s221 = sphi 0, %s207
      %s225 = sphi 0, %s225
      %s227 = sphi 0, %s225
      %s228 = sphi 0, %s227
      %s242 = sphi 0, %s228
      %s246 = sphi 0, %s246
      %s248 = sphi 0, %s246
      %s249 = sphi 0, %s248
      %s263 = sphi 0, %s249
      %s267 = sphi 0, %s267
      %s269 = sphi 0, %s267
      %s270 = sphi 0, %s269
      %s284 = sphi 0, %s270
      %s288 = sphi 0, %s288
      %s290 = sphi 0, %s288
      %s291 = sphi 0, %s290
      %s305 = sphi 0, %s291
      %s309 = sphi 0, %s309
      %s311 = sphi 0, %s309
      %s312 = sphi 0, %s311
      %s326 = sphi 0, %s312
      %s332 = sphi 0, %s334
      %s335 = sphi 0, %s332
      %s336 = sphi 0, %s335
      %s352 = sphi 0, %s336
    $region4: #{tpu_custom_call.1} parent=1 // loop_header_branch
      %26 = sbr.rel (%p24) target = $region8
    $region5: #{tpu_custom_call.1} parent=1 // loop_body
      %s28 = ssub.s32 %s23, 1
      %s29 = ssub.s32 %s23, 2
      %s30 = sadd.s32 %s23, 1
      %s31 = ssub.s32 %s23, %s30
      %p32 = scmp.eq.s32.totalorder %s31, 0
      %s34 = sadd.s32 %s33, 1
      %s35 = scalar_select %p32, %s33, %s34
      %p38 = pneg %p32
      %p39 = scmp.eq.s32.totalorder %s23, 1
      %p40 = por %p38, %p39
      %p41 = scmp.ne.s32.totalorder %s33, %s36
      %p42 = scmp.eq.s32.totalorder %s23, 0
      %p43 = por %p41, %p42
      %p44 = scmp.ne.s32.totalorder %s33, %s36
      %p45 = scmp.eq.s32.totalorder %s28, 1
      %p46 = por %p44, %p45
      %p47 = scmp.ne.s32.totalorder %s36, %s37
      %p48 = scmp.eq.s32.totalorder %s28, 0
      %p49 = por %p47, %p48
      %p50 = scmp.ne.s32.totalorder %s36, %s37
      %p51 = scmp.eq.s32.totalorder %s29, 1
      %p52 = por %p50, %p51
      %p54 = scmp.ne.s32.totalorder %s37, %s53
      %p55 = scmp.eq.s32.totalorder %s29, 0
      %p56 = por %p54, %p55
      %s58 = sadd.s32 %s57, 1
      %p61 = scmp.eq.s32.totalorder %s23, 1
      %p62 = scmp.ne.s32.totalorder %s57, %s59
      %p63 = scmp.eq.s32.totalorder %s23, 0
      %p64 = por %p62, %p63
      %p65 = scmp.ne.s32.totalorder %s57, %s59
      %p66 = scmp.eq.s32.totalorder %s28, 1
      %p67 = por %p65, %p66
      %p68 = scmp.ne.s32.totalorder %s59, %s60
      %p69 = scmp.eq.s32.totalorder %s28, 0
      %p70 = por %p68, %p69
      %p71 = scmp.ne.s32.totalorder %s59, %s60
      %p72 = scmp.eq.s32.totalorder %s29, 1
      %p73 = por %p71, %p72
      %p75 = scmp.ne.s32.totalorder %s60, %s74
      %p76 = scmp.eq.s32.totalorder %s29, 0
      %p77 = por %p75, %p76
      %s79 = sadd.s32 %s78, 1
      %p82 = scmp.eq.s32.totalorder %s23, 1
      %p83 = scmp.ne.s32.totalorder %s78, %s80
      %p84 = scmp.eq.s32.totalorder %s23, 0
      %p85 = por %p83, %p84
      %p86 = scmp.ne.s32.totalorder %s78, %s80
      %p87 = scmp.eq.s32.totalorder %s28, 1
      %p88 = por %p86, %p87
      %p89 = scmp.ne.s32.totalorder %s80, %s81
      %p90 = scmp.eq.s32.totalorder %s28, 0
      %p91 = por %p89, %p90
      %p92 = scmp.ne.s32.totalorder %s80, %s81
      %p93 = scmp.eq.s32.totalorder %s29, 1
      %p94 = por %p92, %p93
      %p96 = scmp.ne.s32.totalorder %s81, %s95
      %p97 = scmp.eq.s32.totalorder %s29, 0
      %p98 = por %p96, %p97
      %s100 = sadd.s32 %s99, 1
      %p103 = scmp.eq.s32.totalorder %s23, 1
      %p104 = scmp.ne.s32.totalorder %s99, %s101
      %p105 = scmp.eq.s32.totalorder %s23, 0
      %p106 = por %p104, %p105
      %p107 = scmp.ne.s32.totalorder %s99, %s101
      %p108 = scmp.eq.s32.totalorder %s28, 1
      %p109 = por %p107, %p108
      %p110 = scmp.ne.s32.totalorder %s101, %s102
      %p111 = scmp.eq.s32.totalorder %s28, 0
      %p112 = por %p110, %p111
      %p113 = scmp.ne.s32.totalorder %s101, %s102
      %p114 = scmp.eq.s32.totalorder %s29, 1
      %p115 = por %p113, %p114
      %p117 = scmp.ne.s32.totalorder %s102, %s116
      %p118 = scmp.eq.s32.totalorder %s29, 0
      %p119 = por %p117, %p118
      %s121 = sadd.s32 %s120, 1
      %p124 = scmp.eq.s32.totalorder %s23, 1
      %p125 = scmp.ne.s32.totalorder %s120, %s122
      %p126 = scmp.eq.s32.totalorder %s23, 0
      %p127 = por %p125, %p126
      %p128 = scmp.ne.s32.totalorder %s120, %s122
      %p129 = scmp.eq.s32.totalorder %s28, 1
      %p130 = por %p128, %p129
      %p131 = scmp.ne.s32.totalorder %s122, %s123
      %p132 = scmp.eq.s32.totalorder %s28, 0
      %p133 = por %p131, %p132
      %p134 = scmp.ne.s32.totalorder %s122, %s123
      %p135 = scmp.eq.s32.totalorder %s29, 1
      %p136 = por %p134, %p135
      %p138 = scmp.ne.s32.totalorder %s123, %s137
      %p139 = scmp.eq.s32.totalorder %s29, 0
      %p140 = por %p138, %p139
      %s142 = sadd.s32 %s141, 1
      %p145 = scmp.eq.s32.totalorder %s23, 1
      %p146 = scmp.ne.s32.totalorder %s141, %s143
      %p147 = scmp.eq.s32.totalorder %s23, 0
      %p148 = por %p146, %p147
      %p149 = scmp.ne.s32.totalorder %s141, %s143
      %p150 = scmp.eq.s32.totalorder %s28, 1
      %p151 = por %p149, %p150
      %p152 = scmp.ne.s32.totalorder %s143, %s144
      %p153 = scmp.eq.s32.totalorder %s28, 0
      %p154 = por %p152, %p153
      %p155 = scmp.ne.s32.totalorder %s143, %s144
      %p156 = scmp.eq.s32.totalorder %s29, 1
      %p157 = por %p155, %p156
      %p159 = scmp.ne.s32.totalorder %s144, %s158
      %p160 = scmp.eq.s32.totalorder %s29, 0
      %p161 = por %p159, %p160
      %s163 = sadd.s32 %s162, 1
      %p166 = scmp.eq.s32.totalorder %s23, 1
      %p167 = scmp.ne.s32.totalorder %s162, %s164
      %p168 = scmp.eq.s32.totalorder %s23, 0
      %p169 = por %p167, %p168
      %p170 = scmp.ne.s32.totalorder %s162, %s164
      %p171 = scmp.eq.s32.totalorder %s28, 1
      %p172 = por %p170, %p171
      %p173 = scmp.ne.s32.totalorder %s164, %s165
      %p174 = scmp.eq.s32.totalorder %s28, 0
      %p175 = por %p173, %p174
      %p176 = scmp.ne.s32.totalorder %s164, %s165
      %p177 = scmp.eq.s32.totalorder %s29, 1
      %p178 = por %p176, %p177
      %p180 = scmp.ne.s32.totalorder %s165, %s179
      %p181 = scmp.eq.s32.totalorder %s29, 0
      %p182 = por %p180, %p181
      %s184 = sadd.s32 %s183, 1
      %p187 = scmp.eq.s32.totalorder %s23, 1
      %p188 = scmp.ne.s32.totalorder %s183, %s185
      %p189 = scmp.eq.s32.totalorder %s23, 0
      %p190 = por %p188, %p189
      %p191 = scmp.ne.s32.totalorder %s183, %s185
      %p192 = scmp.eq.s32.totalorder %s28, 1
      %p193 = por %p191, %p192
      %p194 = scmp.ne.s32.totalorder %s185, %s186
      %p195 = scmp.eq.s32.totalorder %s28, 0
      %p196 = por %p194, %p195
      %p197 = scmp.ne.s32.totalorder %s185, %s186
      %p198 = scmp.eq.s32.totalorder %s29, 1
      %p199 = por %p197, %p198
      %p201 = scmp.ne.s32.totalorder %s186, %s200
      %p202 = scmp.eq.s32.totalorder %s29, 0
      %p203 = por %p201, %p202
      %s205 = sadd.s32 %s204, 1
      %p208 = scmp.eq.s32.totalorder %s23, 1
      %p209 = scmp.ne.s32.totalorder %s204, %s206
      %p210 = scmp.eq.s32.totalorder %s23, 0
      %p211 = por %p209, %p210
      %p212 = scmp.ne.s32.totalorder %s204, %s206
      %p213 = scmp.eq.s32.totalorder %s28, 1
      %p214 = por %p212, %p213
      %p215 = scmp.ne.s32.totalorder %s206, %s207
      %p216 = scmp.eq.s32.totalorder %s28, 0
      %p217 = por %p215, %p216
      %p218 = scmp.ne.s32.totalorder %s206, %s207
      %p219 = scmp.eq.s32.totalorder %s29, 1
      %p220 = por %p218, %p219
      %p222 = scmp.ne.s32.totalorder %s207, %s221
      %p223 = scmp.eq.s32.totalorder %s29, 0
      %p224 = por %p222, %p223
      %s226 = sadd.s32 %s225, 1
      %p229 = scmp.eq.s32.totalorder %s23, 1
      %p230 = scmp.ne.s32.totalorder %s225, %s227
      %p231 = scmp.eq.s32.totalorder %s23, 0
      %p232 = por %p230, %p231
      %p233 = scmp.ne.s32.totalorder %s225, %s227
      %p234 = scmp.eq.s32.totalorder %s28, 1
      %p235 = por %p233, %p234
      %p236 = scmp.ne.s32.totalorder %s227, %s228
      %p237 = scmp.eq.s32.totalorder %s28, 0
      %p238 = por %p236, %p237
      %p239 = scmp.ne.s32.totalorder %s227, %s228
      %p240 = scmp.eq.s32.totalorder %s29, 1
      %p241 = por %p239, %p240
      %p243 = scmp.ne.s32.totalorder %s228, %s242
      %p244 = scmp.eq.s32.totalorder %s29, 0
      %p245 = por %p243, %p244
      %s247 = sadd.s32 %s246, 1
      %p250 = scmp.eq.s32.totalorder %s23, 1
      %p251 = scmp.ne.s32.totalorder %s246, %s248
      %p252 = scmp.eq.s32.totalorder %s23, 0
      %p253 = por %p251, %p252
      %p254 = scmp.ne.s32.totalorder %s246, %s248
      %p255 = scmp.eq.s32.totalorder %s28, 1
      %p256 = por %p254, %p255
      %p257 = scmp.ne.s32.totalorder %s248, %s249
      %p258 = scmp.eq.s32.totalorder %s28, 0
      %p259 = por %p257, %p258
      %p260 = scmp.ne.s32.totalorder %s248, %s249
      %p261 = scmp.eq.s32.totalorder %s29, 1
      %p262 = por %p260, %p261
      %p264 = scmp.ne.s32.totalorder %s249, %s263
      %p265 = scmp.eq.s32.totalorder %s29, 0
      %p266 = por %p264, %p265
      %s268 = sadd.s32 %s267, 1
      %p271 = scmp.eq.s32.totalorder %s23, 1
      %p272 = scmp.ne.s32.totalorder %s267, %s269
      %p273 = scmp.eq.s32.totalorder %s23, 0
      %p274 = por %p272, %p273
      %p275 = scmp.ne.s32.totalorder %s267, %s269
      %p276 = scmp.eq.s32.totalorder %s28, 1
      %p277 = por %p275, %p276
      %p278 = scmp.ne.s32.totalorder %s269, %s270
      %p279 = scmp.eq.s32.totalorder %s28, 0
      %p280 = por %p278, %p279
      %p281 = scmp.ne.s32.totalorder %s269, %s270
      %p282 = scmp.eq.s32.totalorder %s29, 1
      %p283 = por %p281, %p282
      %p285 = scmp.ne.s32.totalorder %s270, %s284
      %p286 = scmp.eq.s32.totalorder %s29, 0
      %p287 = por %p285, %p286
      %s289 = sadd.s32 %s288, 1
      %p292 = scmp.eq.s32.totalorder %s23, 1
      %p293 = scmp.ne.s32.totalorder %s288, %s290
      %p294 = scmp.eq.s32.totalorder %s23, 0
      %p295 = por %p293, %p294
      %p296 = scmp.ne.s32.totalorder %s288, %s290
      %p297 = scmp.eq.s32.totalorder %s28, 1
      %p298 = por %p296, %p297
      %p299 = scmp.ne.s32.totalorder %s290, %s291
      %p300 = scmp.eq.s32.totalorder %s28, 0
      %p301 = por %p299, %p300
      %p302 = scmp.ne.s32.totalorder %s290, %s291
      %p303 = scmp.eq.s32.totalorder %s29, 1
      %p304 = por %p302, %p303
      %p306 = scmp.ne.s32.totalorder %s291, %s305
      %p307 = scmp.eq.s32.totalorder %s29, 0
      %p308 = por %p306, %p307
      %s310 = sadd.s32 %s309, 1
      %p313 = scmp.eq.s32.totalorder %s23, 1
      %p314 = scmp.ne.s32.totalorder %s309, %s311
      %p315 = scmp.eq.s32.totalorder %s23, 0
      %p316 = por %p314, %p315
      %p317 = scmp.ne.s32.totalorder %s309, %s311
      %p318 = scmp.eq.s32.totalorder %s28, 1
      %p319 = por %p317, %p318
      %p320 = scmp.ne.s32.totalorder %s311, %s312
      %p321 = scmp.eq.s32.totalorder %s28, 0
      %p322 = por %p320, %p321
      %p323 = scmp.ne.s32.totalorder %s311, %s312
      %p324 = scmp.eq.s32.totalorder %s29, 1
      %p325 = por %p323, %p324
      %p327 = scmp.ne.s32.totalorder %s312, %s326
      %p328 = scmp.eq.s32.totalorder %s29, 0
      %p329 = por %p327, %p328
      %s330 = ssub.s32 %s23, %s30
      %p331 = scmp.eq.s32.totalorder %s330, 0
      %s333 = sadd.s32 %s332, 1
      %s334 = scalar_select %p331, %s332, %s333
      %p337 = pneg %p331
      %p338 = scmp.eq.s32.totalorder %s23, 1
      %p339 = por %p337, %p338
      %p340 = scmp.ne.s32.totalorder %s332, %s335
      %p341 = scmp.eq.s32.totalorder %s23, 0
      %p342 = por %p340, %p341
      %p343 = scmp.ne.s32.totalorder %s332, %s335
      %p344 = scmp.eq.s32.totalorder %s28, 1
      %p345 = por %p343, %p344
      %p346 = scmp.ne.s32.totalorder %s335, %s336
      %p347 = scmp.eq.s32.totalorder %s28, 0
      %p348 = por %p346, %p347
      %p349 = scmp.ne.s32.totalorder %s335, %s336
      %p350 = scmp.eq.s32.totalorder %s29, 1
      %p351 = por %p349, %p350
      %p353 = scmp.ne.s32.totalorder %s336, %s352
      %p354 = scmp.eq.s32.totalorder %s29, 0
      %p355 = por %p353, %p354
      %p356 = scmp.le.s32.totalorder 1, %s23
      %p357 = scmp.lt.s32.totalorder %s23, 3
      %p358 = pnand %p356, %p357
      %p359 = pneg %p358
      // Predicated region
      $region9: #{tpu_custom_call.1} parent=5 // pred_check
        _
      $region10: #{tpu_custom_call.1} parent=5 // pred_check_branch
        %361 = sbr.rel (%p358) target = $region12
      $region11: #{tpu_custom_call.1} parent=5 // pred_region
        %s362 = ssub.s32 %s23, 1
        // Predicated region
        $region13: #{tpu_custom_call.1} parent=11 // pred_check
          %p363 = pneg %p70
        $region14: #{tpu_custom_call.1} parent=11 // pred_check_branch
          %365 = sbr.rel (%p363) target = $region16
        $region15: #{tpu_custom_call.1} parent=11 // pred_region
          _
        $region16: #{tpu_custom_call.1} parent=11 // pred_fallthru
          _
        // Predicated region
        $region17: #{tpu_custom_call.1} parent=11 // pred_check
          %p366 = pneg %p91
        $region18: #{tpu_custom_call.1} parent=11 // pred_check_branch
          %368 = sbr.rel (%p366) target = $region20
        $region19: #{tpu_custom_call.1} parent=11 // pred_region
          _
        $region20: #{tpu_custom_call.1} parent=11 // pred_fallthru
          _
        // Predicated region
        $region21: #{tpu_custom_call.1} parent=11 // pred_check
          %p369 = pneg %p112
        $region22: #{tpu_custom_call.1} parent=11 // pred_check_branch
          %371 = sbr.rel (%p369) target = $region24
        $region23: #{tpu_custom_call.1} parent=11 // pred_region
          _
        $region24: #{tpu_custom_call.1} parent=11 // pred_fallthru
          _
        // Predicated region
        $region25: #{tpu_custom_call.1} parent=11 // pred_check
          %p372 = pneg %p133
        $region26: #{tpu_custom_call.1} parent=11 // pred_check_branch
          %374 = sbr.rel (%p372) target = $region28
        $region27: #{tpu_custom_call.1} parent=11 // pred_region
          _
        $region28: #{tpu_custom_call.1} parent=11 // pred_fallthru
          _
        // Predicated region
        $region29: #{tpu_custom_call.1} parent=11 // pred_check
          %p375 = pneg %p154
        $region30: #{tpu_custom_call.1} parent=11 // pred_check_branch
          %377 = sbr.rel (%p375) target = $region32
        $region31: #{tpu_custom_call.1} parent=11 // pred_region
          _
        $region32: #{tpu_custom_call.1} parent=11 // pred_fallthru
          _
        // Predicated region
        $region33: #{tpu_custom_call.1} parent=11 // pred_check
          %p378 = pneg %p175
        $region34: #{tpu_custom_call.1} parent=11 // pred_check_branch
          %380 = sbr.rel (%p378) target = $region36
        $region35: #{tpu_custom_call.1} parent=11 // pred_region
          _
        $region36: #{tpu_custom_call.1} parent=11 // pred_fallthru
          _
        // Predicated region
        $region37: #{tpu_custom_call.1} parent=11 // pred_check
          %p381 = pneg %p196
        $region38: #{tpu_custom_call.1} parent=11 // pred_check_branch
          %383 = sbr.rel (%p381) target = $region40
        $region39: #{tpu_custom_call.1} parent=11 // pred_region
          _
        $region40: #{tpu_custom_call.1} parent=11 // pred_fallthru
          _
        // Predicated region
        $region41: #{tpu_custom_call.1} parent=11 // pred_check
          %p384 = pneg %p217
        $region42: #{tpu_custom_call.1} parent=11 // pred_check_branch
          %386 = sbr.rel (%p384) target = $region44
        $region43: #{tpu_custom_call.1} parent=11 // pred_region
          _
        $region44: #{tpu_custom_call.1} parent=11 // pred_fallthru
          _
        // Predicated region
        $region45: #{tpu_custom_call.1} parent=11 // pred_check
          %p387 = pneg %p238
        $region46: #{tpu_custom_call.1} parent=11 // pred_check_branch
          %389 = sbr.rel (%p387) target = $region48
        $region47: #{tpu_custom_call.1} parent=11 // pred_region
          _
        $region48: #{tpu_custom_call.1} parent=11 // pred_fallthru
          _
        // Predicated region
        $region49: #{tpu_custom_call.1} parent=11 // pred_check
          %p390 = pneg %p259
        $region50: #{tpu_custom_call.1} parent=11 // pred_check_branch
          %392 = sbr.rel (%p390) target = $region52
        $region51: #{tpu_custom_call.1} parent=11 // pred_region
          _
        $region52: #{tpu_custom_call.1} parent=11 // pred_fallthru
          _
        // Predicated region
        $region53: #{tpu_custom_call.1} parent=11 // pred_check
          %p393 = pneg %p280
        $region54: #{tpu_custom_call.1} parent=11 // pred_check_branch
          %395 = sbr.rel (%p393) target = $region56
        $region55: #{tpu_custom_call.1} parent=11 // pred_region
          _
        $region56: #{tpu_custom_call.1} parent=11 // pred_fallthru
          _
        // Predicated region
        $region57: #{tpu_custom_call.1} parent=11 // pred_check
          %p396 = pneg %p301
        $region58: #{tpu_custom_call.1} parent=11 // pred_check_branch
          %398 = sbr.rel (%p396) target = $region60
        $region59: #{tpu_custom_call.1} parent=11 // pred_region
          _
        $region60: #{tpu_custom_call.1} parent=11 // pred_fallthru
          _
        // Predicated region
        $region61: #{tpu_custom_call.1} parent=11 // pred_check
          %p399 = pneg %p322
        $region62: #{tpu_custom_call.1} parent=11 // pred_check_branch
          %401 = sbr.rel (%p399) target = $region64
        $region63: #{tpu_custom_call.1} parent=11 // pred_region
          _
        $region64: #{tpu_custom_call.1} parent=11 // pred_fallthru
          _
      $region12: #{tpu_custom_call.1} parent=5 // pred_fallthru
        _
      %p402 = scmp.lt.s32.totalorder %s23, 2
      // Predicated region
      $region65: #{tpu_custom_call.1} parent=5 // pred_check
        %p403 = pneg %p402
      $region66: #{tpu_custom_call.1} parent=5 // pred_check_branch
        %405 = sbr.rel (%p403) target = $region68
      $region67: #{tpu_custom_call.1} parent=5 // pred_region
        // Predicated region
        $region69: #{tpu_custom_call.1} parent=67 // pred_check
          %p406 = pneg %p43
        $region70: #{tpu_custom_call.1} parent=67 // pred_check_branch
          %408 = sbr.rel (%p406) target = $region72
        $region71: #{tpu_custom_call.1} parent=67 // pred_region
          %p409 = scmp.lt.s32.totalorder %s23, 1
          %s410 = scalar_select %p409, %s23, 1
          %s411 = smul.addr %s410, 8
          %s412 = scalar_lea.vmem %s0, %s411
        $region72: #{tpu_custom_call.1} parent=67 // pred_fallthru
          _
      $region68: #{tpu_custom_call.1} parent=5 // pred_fallthru
        _
      %p413 = scmp.le.s32.totalorder 1, %s23
      %p414 = scmp.lt.s32.totalorder %s23, 3
      %p415 = pnand %p413, %p414
      %p416 = pneg %p415
      // Predicated region
      $region73: #{tpu_custom_call.1} parent=5 // pred_check
        _
      $region74: #{tpu_custom_call.1} parent=5 // pred_check_branch
        %418 = sbr.rel (%p415) target = $region76
      $region75: #{tpu_custom_call.1} parent=5 // pred_region
        %s419 = ssub.s32 %s23, 1
        %p420 = scmp.lt.s32.totalorder %s28, 1
        %s421 = scalar_select %p420, %s28, 1
        %s422 = smul.addr %s421, 8
        %s423 = scalar_lea.vmem %s0, %s422
        %p424 = pneg %p49
        %p425 = pneg %p46
        %p426 = pneg %p70
        %p427 = pneg %p67
        %p428 = pneg %p91
        %p429 = pneg %p88
        %p430 = pneg %p112
        %p431 = pneg %p109
        %p432 = pneg %p133
        %p433 = pneg %p130
        %p434 = pneg %p154
        %p435 = pneg %p151
        %p436 = pneg %p175
        %p437 = pneg %p172
        %p438 = pneg %p196
        %p439 = pneg %p193
        %p440 = pneg %p217
        %p441 = pneg %p214
        %p442 = pneg %p238
        %p443 = pneg %p235
        %p444 = pneg %p259
        %p445 = pneg %p256
        %p446 = pneg %p280
        %p447 = pneg %p277
        %p448 = pneg %p301
        %p449 = pneg %p298
        %p450 = pneg %p322
        %p451 = pneg %p319
        %p452 = pneg %p348
        %p453 = pneg %p345
        %s454 = sand.u32 %s335, 1
        %s455 = scalar_lea.sflag [#allocation4], %s454
        %s456 = sand.u32 %s335, 1
        %s457 = smul.addr %s456, 8
        %s458 = scalar_lea.vmem [#allocation3], %s457
        %p459 = scmp.lt.s32.totalorder %s28, 1
        %s460 = scalar_select %p459, %s28, 1
        %s461 = smul.addr %s460, 8
        %s462 = scalar_lea.vmem %s0, %s461
        %v464 = vld [vmem:[%s462] sm:$0xff]
        %v465 = vld [vmem:[%s2] sm:$0x1]
        %v466 = vld [vmem:[%s3] sm:$0x1]
        %v467 = vld [vmem:[%s6] sm:$0xf]
        %v468 = vld [vmem:[%s6 + $0x4] sm:$0xf]
        %v469 = vld [vmem:[%s6 + $0x8] sm:$0xf]
        %v470 = vld [vmem:[%s6 + $0xc] sm:$0xf]
        %v471 = vld [vmem:[%s7] sm:$0x1]
        %v472 = vld [vmem:[%s8] sm:$0xf]
        %v473 = vld [vmem:[%s8 + $0x4] sm:$0xf]
        %v474 = vld [vmem:[%s8 + $0x8] sm:$0xf]
        %v475 = vld [vmem:[%s8 + $0xc] sm:$0xf]
        %v476 = vld [vmem:[%s9] sm:$0x1]
        loop: start=0, step=1, limit=2
        $region77: #{tpu_custom_call.1} parent=75 // loop_pre_header
          _
        $region78: #{tpu_custom_call.1} parent=75 // loop_header
          %s478 = sphi 0, %s482
          %p479 = scmp.ge.s32.totalorder %s478, 2
          %v483 = vphi %v464, %v1117
        $region79: #{tpu_custom_call.1} parent=75 // loop_header_branch
          %481 = sbr.rel (%p479) target = $region83
        $region80: #{tpu_custom_call.1} parent=75 // loop_body
          %vm484 = vcmask 261120
          %v485 = vsel %vm484, %v483, 0.0
          %486 = vadd.xlane.f32.xlu0 %v485
          %v487 = vpop.xlane.xlu0 %486
          %v488 = vrcp.pop 32.0
          %v489 = vmul.f32 %v487, %v488
          %v490 = vsub.f32 %v483, %v489
          %v491 = vmul.f32 %v490, %v490
          %v492 = vsel %vm484, %v491, 0.0
          %493 = vadd.xlane.f32.xlu0 %v492
          %v494 = vpop.xlane.xlu0 %493
          %v495 = vmul.f32 %v494, %v488
          %v496 = vadd.f32 %v495, 1e-05
          %v497 = vrsqrt.pop %v496
          %v498 = vmul.f32 %v490, %v497
          %v500 = vlaneseq
          %v501 = vshrl.u32 %v500, 7
          %v502 = vsub.s32 0, %v501
          %v503 = vrot.slane %v465, %v502
          %v505 = vmul.f32 %v498, %v503
          %v507 = vlaneseq
          %v508 = vshrl.u32 %v507, 7
          %v509 = vsub.s32 0, %v508
          %v510 = vrot.slane %v466, %v509
          %v512 = vadd.f32 %v505, %v510
          %v513 = vpack.c.bf16 %v512, %v512
          %v515 = vlaneseq
          %v516 = vshrl.u32 %v515, 7
          %v517 = vsub.s32 0, %v516
          %v518 = vrot.slane %v471, %v517
          %v524 = vunpack.c.l.b16 %v467
          %v525 = vunpack.c.l.b16 %v468
          %v526 = vunpack.c.l.b16 %v469
          %v527 = vunpack.c.l.b16 %v470
          %v528 = vpack.c.b16 %v525, %v524
          %v529 = vpack.c.b16 %v527, %v526
          %v533 = vsel %vm484, %v513, 0
          %535 = vmatprep.subr.bf16.mxu0 0
          %536 = vmatpush1.bf16.msra.mxu0 %v528
          %537 = vmatprep.subr.bf16.mxu0 0
          %538 = vmatpush1.bf16.msra.mxu0 %v529
          %539 = vmatprep.subr.bf16.mxu0 0
          %540 = vmatpush1.bf16.msra.mxu0 0
          %541 = vmatprep.subr.bf16.mxu0 0
          %542 = vmatpush1.bf16.msra.mxu0 0
          %543 = vmatprep.subr.bf16.mxu0 0
          %544 = vmatpush1.bf16.msra.mxu0 0
          %545 = vmatprep.subr.bf16.mxu0 0
          %546 = vmatpush1.bf16.msra.mxu0 0
          %547 = vmatprep.subr.bf16.mxu0 0
          %548 = vmatpush1.bf16.msra.mxu0 0
          %549 = vmatprep.subr.bf16.mxu0 0
          %550 = vmatpush1.bf16.msra.mxu0 0
          %551 = vmatprep.subr.bf16.mxu0 0
          %552 = vmatpush1.bf16.msra.mxu0 0
          %553 = vmatprep.subr.bf16.mxu0 0
          %554 = vmatpush1.bf16.msra.mxu0 0
          %555 = vmatprep.subr.bf16.mxu0 0
          %556 = vmatpush1.bf16.msra.mxu0 0
          %557 = vmatprep.subr.bf16.mxu0 0
          %558 = vmatpush1.bf16.msra.mxu0 0
          %559 = vmatprep.subr.bf16.mxu0 0
          %560 = vmatpush1.bf16.msra.mxu0 0
          %561 = vmatprep.subr.bf16.mxu0 0
          %562 = vmatpush1.bf16.msra.mxu0 0
          %563 = vmatprep.subr.bf16.mxu0 0
          %564 = vmatpush1.bf16.msra.mxu0 0
          %565 = vmatprep.subr.bf16.mxu0 0
          %566 = vmatpush1.bf16.msra.mxu0 0
          %567 = vmatprep.mubr.bf16.mxu0 0
          %568 = vmatmul.mubr.bf16.gmra.mrb[0].mxu0 %v533
          %v569 = vpop.f32.mrb[0].mxu0
          %v570 = vadd.f32 %v518, %v569
          %v571 = vpop.f32.mrb[0].mxu0
          %v572 = vpop.f32.mrb[0].mxu0
          %v573 = vpop.f32.mrb[0].mxu0
          %574 = vdwg.mxu0
          %v575 = vpack.c.bf16 %v570, %v570
          %s576 = smul.u32 %s478, 8
          %s577 = scalar_lea.vmem %s1, %s576
          %v578 = vld [vmem:[%s577] sm:$0xff]
          %580 = vrot.lane.b32.xlu0 %v575, 96
          %v581 = vpop.permute.xlu0 %580
          %vm582 = vcmask 64512
          %v584 = vsel %vm582, %v575, 0
          %v587 = vsel %vm582, %v581, 0
          %589 = vmatprep.subr.bf16.mxu0 0
          %590 = vmatpush1.bf16.xpose.msra.mxu0 %v587
          %591 = vmatprep.subr.bf16.mxu0 0
          %592 = vmatpush1.bf16.xpose.msra.mxu0 0
          %593 = vmatprep.subr.bf16.mxu0 0
          %594 = vmatpush1.bf16.xpose.msra.mxu0 0
          %595 = vmatprep.subr.bf16.mxu0 0
          %596 = vmatpush1.bf16.xpose.msra.mxu0 0
          %597 = vmatprep.subr.bf16.mxu0 0
          %598 = vmatpush1.bf16.xpose.msra.mxu0 0
          %599 = vmatprep.subr.bf16.mxu0 0
          %600 = vmatpush1.bf16.xpose.msra.mxu0 0
          %601 = vmatprep.subr.bf16.mxu0 0
          %602 = vmatpush1.bf16.xpose.msra.mxu0 0
          %603 = vmatprep.subr.bf16.mxu0 0
          %604 = vmatpush1.bf16.xpose.msra.mxu0 0
          %605 = vmatprep.subr.bf16.mxu0 0
          %606 = vmatpush1.bf16.xpose.msra.mxu0 0
          %607 = vmatprep.subr.bf16.mxu0 0
          %608 = vmatpush1.bf16.xpose.msra.mxu0 0
          %609 = vmatprep.subr.bf16.mxu0 0
          %610 = vmatpush1.bf16.xpose.msra.mxu0 0
          %611 = vmatprep.subr.bf16.mxu0 0
          %612 = vmatpush1.bf16.xpose.msra.mxu0 0
          %613 = vmatprep.subr.bf16.mxu0 0
          %614 = vmatpush1.bf16.xpose.msra.mxu0 0
          %615 = vmatprep.subr.bf16.mxu0 0
          %616 = vmatpush1.bf16.xpose.msra.mxu0 0
          %617 = vmatprep.subr.bf16.mxu0 0
          %618 = vmatpush1.bf16.xpose.msra.mxu0 0
          %619 = vmatprep.subr.bf16.mxu0 0
          %620 = vmatpush1.bf16.xpose.msra.mxu0 0
          %621 = vmatprep.mubr.bf16.mxu0 0
          %622 = vmatmul.mubr.bf16.gmra.mrb[0].mxu0 %v584
          %v623 = vpop.f32.mrb[0].mxu0
          %v624 = vadd.f32 0.0, %v623
          %v625 = vpop.f32.mrb[0].mxu0
          %v626 = vpop.f32.mrb[0].mxu0
          %v627 = vpop.f32.mrb[0].mxu0
          %628 = vdwg.mxu0
          %v629 = vmul.f32 %v624, %v578
          %v630 = vsel %vm582, %v629, -inf
          %631 = vmax.xlane.f32.xlu0 %v630
          %v632 = vpop.xlane.xlu0 %631
          %v633 = vsub.f32 %v629, %v632
          %v634 = vmul.f32 %v633, 1.442695
          %v635 = vpow.pop %v634
          %v636 = vsel %vm582, %v635, 0.0
          %637 = vadd.xlane.f32.xlu0 %v636
          %v638 = vpop.xlane.xlu0 %637
          %v639 = vrcp.pop %v638
          %v640 = vmul.f32 %v635, %v639
          %v641 = vpack.c.bf16 %v640, %v640
          %642 = vrot.lane.b32.xlu0 %v575, 64
          %v643 = vpop.permute.xlu0 %642
          %v645 = vsel %vm582, %v641, 0
          %vm647 = vcmask 1043456
          %v649 = vsel %vm647, %v643, 0
          %651 = vmatprep.subr.bf16.mxu0 0
          %652 = vmatpush1.bf16.msra.mxu0 %v649
          %653 = vmatprep.subr.bf16.mxu0 0
          %654 = vmatpush1.bf16.msra.mxu0 0
          %655 = vmatprep.subr.bf16.mxu0 0
          %656 = vmatpush1.bf16.msra.mxu0 0
          %657 = vmatprep.subr.bf16.mxu0 0
          %658 = vmatpush1.bf16.msra.mxu0 0
          %659 = vmatprep.subr.bf16.mxu0 0
          %660 = vmatpush1.bf16.msra.mxu0 0
          %661 = vmatprep.subr.bf16.mxu0 0
          %662 = vmatpush1.bf16.msra.mxu0 0
          %663 = vmatprep.subr.bf16.mxu0 0
          %664 = vmatpush1.bf16.msra.mxu0 0
          %665 = vmatprep.subr.bf16.mxu0 0
          %666 = vmatpush1.bf16.msra.mxu0 0
          %667 = vmatprep.subr.bf16.mxu0 0
          %668 = vmatpush1.bf16.msra.mxu0 0
          %669 = vmatprep.subr.bf16.mxu0 0
          %670 = vmatpush1.bf16.msra.mxu0 0
          %671 = vmatprep.subr.bf16.mxu0 0
          %672 = vmatpush1.bf16.msra.mxu0 0
          %673 = vmatprep.subr.bf16.mxu0 0
          %674 = vmatpush1.bf16.msra.mxu0 0
          %675 = vmatprep.subr.bf16.mxu0 0
          %676 = vmatpush1.bf16.msra.mxu0 0
          %677 = vmatprep.subr.bf16.mxu0 0
          %678 = vmatpush1.bf16.msra.mxu0 0
          %679 = vmatprep.subr.bf16.mxu0 0
          %680 = vmatpush1.bf16.msra.mxu0 0
          %681 = vmatprep.subr.bf16.mxu0 0
          %682 = vmatpush1.bf16.msra.mxu0 0
          %683 = vmatprep.mubr.bf16.mxu0 0
          %684 = vmatmul.mubr.bf16.gmra.mrb[0].mxu0 %v645
          %v685 = vpop.f32.mrb[0].mxu0
          %v686 = vadd.f32 0.0, %v685
          %v687 = vpop.f32.mrb[0].mxu0
          %v688 = vpop.f32.mrb[0].mxu0
          %v689 = vpop.f32.mrb[0].mxu0
          %690 = vdwg.mxu0
          %v691 = vpack.c.bf16 %v686, %v686
          %vm692 = vcmask 60416
          %693 = vst.msk [vmem:[#allocation2] sm:$0xf] %vm692, %v691
          %694 = vrot.lane.b32.xlu0 %v575, 120
          %v695 = vpop.permute.xlu0 %694
          %696 = vrot.lane.b32.xlu0 %v575, 88
          %v697 = vpop.permute.xlu0 %696
          %v699 = vsel %vm582, %v695, 0
          %v702 = vsel %vm582, %v697, 0
          %704 = vmatprep.subr.bf16.mxu0 0
          %705 = vmatpush1.bf16.xpose.msra.mxu0 %v702
          %706 = vmatprep.subr.bf16.mxu0 0
          %707 = vmatpush1.bf16.xpose.msra.mxu0 0
          %708 = vmatprep.subr.bf16.mxu0 0
          %709 = vmatpush1.bf16.xpose.msra.mxu0 0
          %710 = vmatprep.subr.bf16.mxu0 0
          %711 = vmatpush1.bf16.xpose.msra.mxu0 0
          %712 = vmatprep.subr.bf16.mxu0 0
          %713 = vmatpush1.bf16.xpose.msra.mxu0 0
          %714 = vmatprep.subr.bf16.mxu0 0
          %715 = vmatpush1.bf16.xpose.msra.mxu0 0
          %716 = vmatprep.subr.bf16.mxu0 0
          %717 = vmatpush1.bf16.xpose.msra.mxu0 0
          %718 = vmatprep.subr.bf16.mxu0 0
          %719 = vmatpush1.bf16.xpose.msra.mxu0 0
          %720 = vmatprep.subr.bf16.mxu0 0
          %721 = vmatpush1.bf16.xpose.msra.mxu0 0
          %722 = vmatprep.subr.bf16.mxu0 0
          %723 = vmatpush1.bf16.xpose.msra.mxu0 0
          %724 = vmatprep.subr.bf16.mxu0 0
          %725 = vmatpush1.bf16.xpose.msra.mxu0 0
          %726 = vmatprep.subr.bf16.mxu0 0
          %727 = vmatpush1.bf16.xpose.msra.mxu0 0
          %728 = vmatprep.subr.bf16.mxu0 0
          %729 = vmatpush1.bf16.xpose.msra.mxu0 0
          %730 = vmatprep.subr.bf16.mxu0 0
          %731 = vmatpush1.bf16.xpose.msra.mxu0 0
          %732 = vmatprep.subr.bf16.mxu0 0
          %733 = vmatpush1.bf16.xpose.msra.mxu0 0
          %734 = vmatprep.subr.bf16.mxu0 0
          %735 = vmatpush1.bf16.xpose.msra.mxu0 0
          %736 = vmatprep.mubr.bf16.mxu0 0
          %737 = vmatmul.mubr.bf16.gmra.mrb[0].mxu0 %v699
          %v738 = vpop.f32.mrb[0].mxu0
          %v739 = vadd.f32 0.0, %v738
          %v740 = vpop.f32.mrb[0].mxu0
          %v741 = vpop.f32.mrb[0].mxu0
          %v742 = vpop.f32.mrb[0].mxu0
          %743 = vdwg.mxu0
          %v744 = vmul.f32 %v739, %v578
          %v745 = vsel %vm582, %v744, -inf
          %746 = vmax.xlane.f32.xlu0 %v745
          %v747 = vpop.xlane.xlu0 %746
          %v748 = vsub.f32 %v744, %v747
          %v749 = vmul.f32 %v748, 1.442695
          %v750 = vpow.pop %v749
          %v751 = vsel %vm582, %v750, 0.0
          %752 = vadd.xlane.f32.xlu0 %v751
          %v753 = vpop.xlane.xlu0 %752
          %v754 = vrcp.pop %v753
          %v755 = vmul.f32 %v750, %v754
          %v756 = vpack.c.bf16 %v755, %v755
          %757 = vrot.lane.b32.xlu0 %v575, 56
          %v758 = vpop.permute.xlu0 %757
          %v760 = vsel %vm582, %v756, 0
          %v763 = vsel %vm647, %v758, 0
          %765 = vmatprep.subr.bf16.mxu0 0
          %766 = vmatpush1.bf16.msra.mxu0 %v763
          %767 = vmatprep.subr.bf16.mxu0 0
          %768 = vmatpush1.bf16.msra.mxu0 0
          %769 = vmatprep.subr.bf16.mxu0 0
          %770 = vmatpush1.bf16.msra.mxu0 0
          %771 = vmatprep.subr.bf16.mxu0 0
          %772 = vmatpush1.bf16.msra.mxu0 0
          %773 = vmatprep.subr.bf16.mxu0 0
          %774 = vmatpush1.bf16.msra.mxu0 0
          %775 = vmatprep.subr.bf16.mxu0 0
          %776 = vmatpush1.bf16.msra.mxu0 0
          %777 = vmatprep.subr.bf16.mxu0 0
          %778 = vmatpush1.bf16.msra.mxu0 0
          %779 = vmatprep.subr.bf16.mxu0 0
          %780 = vmatpush1.bf16.msra.mxu0 0
          %781 = vmatprep.subr.bf16.mxu0 0
          %782 = vmatpush1.bf16.msra.mxu0 0
          %783 = vmatprep.subr.bf16.mxu0 0
          %784 = vmatpush1.bf16.msra.mxu0 0
          %785 = vmatprep.subr.bf16.mxu0 0
          %786 = vmatpush1.bf16.msra.mxu0 0
          %787 = vmatprep.subr.bf16.mxu0 0
          %788 = vmatpush1.bf16.msra.mxu0 0
          %789 = vmatprep.subr.bf16.mxu0 0
          %790 = vmatpush1.bf16.msra.mxu0 0
          %791 = vmatprep.subr.bf16.mxu0 0
          %792 = vmatpush1.bf16.msra.mxu0 0
          %793 = vmatprep.subr.bf16.mxu0 0
          %794 = vmatpush1.bf16.msra.mxu0 0
          %795 = vmatprep.subr.bf16.mxu0 0
          %796 = vmatpush1.bf16.msra.mxu0 0
          %797 = vmatprep.mubr.bf16.mxu0 0
          %798 = vmatmul.mubr.bf16.gmra.mrb[0].mxu0 %v760
          %v799 = vpop.f32.mrb[0].mxu0
          %v800 = vadd.f32 0.0, %v799
          %v801 = vpop.f32.mrb[0].mxu0
          %v802 = vpop.f32.mrb[0].mxu0
          %v803 = vpop.f32.mrb[0].mxu0
          %804 = vdwg.mxu0
          %v805 = vpack.c.bf16 %v800, %v800
          %v807 = vunpack.c.l.b16 %v805
          %v808 = vpack.c.b16 %v807, %v807
          %809 = vrot.lane.b32.xlu0 %v808, 8
          %v810 = vpop.permute.xlu0 %809
          %vm812 = vcmask 126016
          %813 = vst.msk [vmem:[#allocation2] sm:$0xf] %vm812, %v810
          %814 = vrot.lane.b32.xlu0 %v575, 112
          %v815 = vpop.permute.xlu0 %814
          %816 = vrot.lane.b32.xlu0 %v575, 80
          %v817 = vpop.permute.xlu0 %816
          %v819 = vsel %vm582, %v815, 0
          %v822 = vsel %vm582, %v817, 0
          %824 = vmatprep.subr.bf16.mxu0 0
          %825 = vmatpush1.bf16.xpose.msra.mxu0 %v822
          %826 = vmatprep.subr.bf16.mxu0 0
          %827 = vmatpush1.bf16.xpose.msra.mxu0 0
          %828 = vmatprep.subr.bf16.mxu0 0
          %829 = vmatpush1.bf16.xpose.msra.mxu0 0
          %830 = vmatprep.subr.bf16.mxu0 0
          %831 = vmatpush1.bf16.xpose.msra.mxu0 0
          %832 = vmatprep.subr.bf16.mxu0 0
          %833 = vmatpush1.bf16.xpose.msra.mxu0 0
          %834 = vmatprep.subr.bf16.mxu0 0
          %835 = vmatpush1.bf16.xpose.msra.mxu0 0
          %836 = vmatprep.subr.bf16.mxu0 0
          %837 = vmatpush1.bf16.xpose.msra.mxu0 0
          %838 = vmatprep.subr.bf16.mxu0 0
          %839 = vmatpush1.bf16.xpose.msra.mxu0 0
          %840 = vmatprep.subr.bf16.mxu0 0
          %841 = vmatpush1.bf16.xpose.msra.mxu0 0
          %842 = vmatprep.subr.bf16.mxu0 0
          %843 = vmatpush1.bf16.xpose.msra.mxu0 0
          %844 = vmatprep.subr.bf16.mxu0 0
          %845 = vmatpush1.bf16.xpose.msra.mxu0 0
          %846 = vmatprep.subr.bf16.mxu0 0
          %847 = vmatpush1.bf16.xpose.msra.mxu0 0
          %848 = vmatprep.subr.bf16.mxu0 0
          %849 = vmatpush1.bf16.xpose.msra.mxu0 0
          %850 = vmatprep.subr.bf16.mxu0 0
          %851 = vmatpush1.bf16.xpose.msra.mxu0 0
          %852 = vmatprep.subr.bf16.mxu0 0
          %853 = vmatpush1.bf16.xpose.msra.mxu0 0
          %854 = vmatprep.subr.bf16.mxu0 0
          %855 = vmatpush1.bf16.xpose.msra.mxu0 0
          %856 = vmatprep.mubr.bf16.mxu0 0
          %857 = vmatmul.mubr.bf16.gmra.mrb[0].mxu0 %v819
          %v858 = vpop.f32.mrb[0].mxu0
          %v859 = vadd.f32 0.0, %v858
          %v860 = vpop.f32.mrb[0].mxu0
          %v861 = vpop.f32.mrb[0].mxu0
          %v862 = vpop.f32.mrb[0].mxu0
          %863 = vdwg.mxu0
          %v864 = vmul.f32 %v859, %v578
          %v865 = vsel %vm582, %v864, -inf
          %866 = vmax.xlane.f32.xlu0 %v865
          %v867 = vpop.xlane.xlu0 %866
          %v868 = vsub.f32 %v864, %v867
          %v869 = vmul.f32 %v868, 1.442695
          %v870 = vpow.pop %v869
          %v871 = vsel %vm582, %v870, 0.0
          %872 = vadd.xlane.f32.xlu0 %v871
          %v873 = vpop.xlane.xlu0 %872
          %v874 = vrcp.pop %v873
          %v875 = vmul.f32 %v870, %v874
          %v876 = vpack.c.bf16 %v875, %v875
          %877 = vrot.lane.b32.xlu0 %v575, 48
          %v878 = vpop.permute.xlu0 %877
          %v880 = vsel %vm582, %v876, 0
          %v883 = vsel %vm647, %v878, 0
          %885 = vmatprep.subr.bf16.mxu0 0
          %886 = vmatpush1.bf16.msra.mxu0 %v883
          %887 = vmatprep.subr.bf16.mxu0 0
          %888 = vmatpush1.bf16.msra.mxu0 0
          %889 = vmatprep.subr.bf16.mxu0 0
          %890 = vmatpush1.bf16.msra.mxu0 0
          %891 = vmatprep.subr.bf16.mxu0 0
          %892 = vmatpush1.bf16.msra.mxu0 0
          %893 = vmatprep.subr.bf16.mxu0 0
          %894 = vmatpush1.bf16.msra.mxu0 0
          %895 = vmatprep.subr.bf16.mxu0 0
          %896 = vmatpush1.bf16.msra.mxu0 0
          %897 = vmatprep.subr.bf16.mxu0 0
          %898 = vmatpush1.bf16.msra.mxu0 0
          %899 = vmatprep.subr.bf16.mxu0 0
          %900 = vmatpush1.bf16.msra.mxu0 0
          %901 = vmatprep.subr.bf16.mxu0 0
          %902 = vmatpush1.bf16.msra.mxu0 0
          %903 = vmatprep.subr.bf16.mxu0 0
          %904 = vmatpush1.bf16.msra.mxu0 0
          %905 = vmatprep.subr.bf16.mxu0 0
          %906 = vmatpush1.bf16.msra.mxu0 0
          %907 = vmatprep.subr.bf16.mxu0 0
          %908 = vmatpush1.bf16.msra.mxu0 0
          %909 = vmatprep.subr.bf16.mxu0 0
          %910 = vmatpush1.bf16.msra.mxu0 0
          %911 = vmatprep.subr.bf16.mxu0 0
          %912 = vmatpush1.bf16.msra.mxu0 0
          %913 = vmatprep.subr.bf16.mxu0 0
          %914 = vmatpush1.bf16.msra.mxu0 0
          %915 = vmatprep.subr.bf16.mxu0 0
          %916 = vmatpush1.bf16.msra.mxu0 0
          %917 = vmatprep.mubr.bf16.mxu0 0
          %918 = vmatmul.mubr.bf16.gmra.mrb[0].mxu0 %v880
          %v919 = vpop.f32.mrb[0].mxu0
          %v920 = vadd.f32 0.0, %v919
          %v921 = vpop.f32.mrb[0].mxu0
          %v922 = vpop.f32.mrb[0].mxu0
          %v923 = vpop.f32.mrb[0].mxu0
          %924 = vdwg.mxu0
          %v925 = vpack.c.bf16 %v920, %v920
          %v927 = vunpack.c.l.b16 %v925
          %v928 = vpack.c.b16 %v927, %v927
          %929 = vrot.lane.b32.xlu0 %v928, 16
          %v930 = vpop.permute.xlu0 %929
          %vm932 = vcmask 191616
          %933 = vst.msk [vmem:[#allocation2] sm:$0xf] %vm932, %v930
          %934 = vrot.lane.b32.xlu0 %v575, 104
          %v935 = vpop.permute.xlu0 %934
          %936 = vrot.lane.b32.xlu0 %v575, 72
          %v937 = vpop.permute.xlu0 %936
          %v939 = vsel %vm582, %v935, 0
          %v942 = vsel %vm582, %v937, 0
          %944 = vmatprep.subr.bf16.mxu0 0
          %945 = vmatpush1.bf16.xpose.msra.mxu0 %v942
          %946 = vmatprep.subr.bf16.mxu0 0
          %947 = vmatpush1.bf16.xpose.msra.mxu0 0
          %948 = vmatprep.subr.bf16.mxu0 0
          %949 = vmatpush1.bf16.xpose.msra.mxu0 0
          %950 = vmatprep.subr.bf16.mxu0 0
          %951 = vmatpush1.bf16.xpose.msra.mxu0 0
          %952 = vmatprep.subr.bf16.mxu0 0
          %953 = vmatpush1.bf16.xpose.msra.mxu0 0
          %954 = vmatprep.subr.bf16.mxu0 0
          %955 = vmatpush1.bf16.xpose.msra.mxu0 0
          %956 = vmatprep.subr.bf16.mxu0 0
          %957 = vmatpush1.bf16.xpose.msra.mxu0 0
          %958 = vmatprep.subr.bf16.mxu0 0
          %959 = vmatpush1.bf16.xpose.msra.mxu0 0
          %960 = vmatprep.subr.bf16.mxu0 0
          %961 = vmatpush1.bf16.xpose.msra.mxu0 0
          %962 = vmatprep.subr.bf16.mxu0 0
          %963 = vmatpush1.bf16.xpose.msra.mxu0 0
          %964 = vmatprep.subr.bf16.mxu0 0
          %965 = vmatpush1.bf16.xpose.msra.mxu0 0
          %966 = vmatprep.subr.bf16.mxu0 0
          %967 = vmatpush1.bf16.xpose.msra.mxu0 0
          %968 = vmatprep.subr.bf16.mxu0 0
          %969 = vmatpush1.bf16.xpose.msra.mxu0 0
          %970 = vmatprep.subr.bf16.mxu0 0
          %971 = vmatpush1.bf16.xpose.msra.mxu0 0
          %972 = vmatprep.subr.bf16.mxu0 0
          %973 = vmatpush1.bf16.xpose.msra.mxu0 0
          %974 = vmatprep.subr.bf16.mxu0 0
          %975 = vmatpush1.bf16.xpose.msra.mxu0 0
          %976 = vmatprep.mubr.bf16.mxu0 0
          %977 = vmatmul.mubr.bf16.gmra.mrb[0].mxu0 %v939
          %v978 = vpop.f32.mrb[0].mxu0
          %v979 = vadd.f32 0.0, %v978
          %v980 = vpop.f32.mrb[0].mxu0
          %v981 = vpop.f32.mrb[0].mxu0
          %v982 = vpop.f32.mrb[0].mxu0
          %983 = vdwg.mxu0
          %v984 = vmul.f32 %v979, %v578
          %v985 = vsel %vm582, %v984, -inf
          %986 = vmax.xlane.f32.xlu0 %v985
          %v987 = vpop.xlane.xlu0 %986
          %v988 = vsub.f32 %v984, %v987
          %v989 = vmul.f32 %v988, 1.442695
          %v990 = vpow.pop %v989
          %v991 = vsel %vm582, %v990, 0.0
          %992 = vadd.xlane.f32.xlu0 %v991
          %v993 = vpop.xlane.xlu0 %992
          %v994 = vrcp.pop %v993
          %v995 = vmul.f32 %v990, %v994
          %v996 = vpack.c.bf16 %v995, %v995
          %997 = vrot.lane.b32.xlu0 %v575, 40
          %v998 = vpop.permute.xlu0 %997
          %v1000 = vsel %vm582, %v996, 0
          %v1003 = vsel %vm647, %v998, 0
          %1005 = vmatprep.subr.bf16.mxu0 0
          %1006 = vmatpush1.bf16.msra.mxu0 %v1003
          %1007 = vmatprep.subr.bf16.mxu0 0
          %1008 = vmatpush1.bf16.msra.mxu0 0
          %1009 = vmatprep.subr.bf16.mxu0 0
          %1010 = vmatpush1.bf16.msra.mxu0 0
          %1011 = vmatprep.subr.bf16.mxu0 0
          %1012 = vmatpush1.bf16.msra.mxu0 0
          %1013 = vmatprep.subr.bf16.mxu0 0
          %1014 = vmatpush1.bf16.msra.mxu0 0
          %1015 = vmatprep.subr.bf16.mxu0 0
          %1016 = vmatpush1.bf16.msra.mxu0 0
          %1017 = vmatprep.subr.bf16.mxu0 0
          %1018 = vmatpush1.bf16.msra.mxu0 0
          %1019 = vmatprep.subr.bf16.mxu0 0
          %1020 = vmatpush1.bf16.msra.mxu0 0
          %1021 = vmatprep.subr.bf16.mxu0 0
          %1022 = vmatpush1.bf16.msra.mxu0 0
          %1023 = vmatprep.subr.bf16.mxu0 0
          %1024 = vmatpush1.bf16.msra.mxu0 0
          %1025 = vmatprep.subr.bf16.mxu0 0
          %1026 = vmatpush1.bf16.msra.mxu0 0
          %1027 = vmatprep.subr.bf16.mxu0 0
          %1028 = vmatpush1.bf16.msra.mxu0 0
          %1029 = vmatprep.subr.bf16.mxu0 0
          %1030 = vmatpush1.bf16.msra.mxu0 0
          %1031 = vmatprep.subr.bf16.mxu0 0
          %1032 = vmatpush1.bf16.msra.mxu0 0
          %1033 = vmatprep.subr.bf16.mxu0 0
          %1034 = vmatpush1.bf16.msra.mxu0 0
          %1035 = vmatprep.subr.bf16.mxu0 0
          %1036 = vmatpush1.bf16.msra.mxu0 0
          %1037 = vmatprep.mubr.bf16.mxu0 0
          %1038 = vmatmul.mubr.bf16.gmra.mrb[0].mxu0 %v1000
          %v1039 = vpop.f32.mrb[0].mxu0
          %v1040 = vadd.f32 0.0, %v1039
          %v1041 = vpop.f32.mrb[0].mxu0
          %v1042 = vpop.f32.mrb[0].mxu0
          %v1043 = vpop.f32.mrb[0].mxu0
          %1044 = vdwg.mxu0
          %v1045 = vpack.c.bf16 %v1040, %v1040
          %v1047 = vunpack.c.l.b16 %v1045
          %v1048 = vpack.c.b16 %v1047, %v1047
          %1049 = vrot.lane.b32.xlu0 %v1048, 24
          %v1050 = vpop.permute.xlu0 %1049
          %vm1052 = vcmask 257216
          %1053 = vst.msk [vmem:[#allocation2] sm:$0xf] %vm1052, %v1050
          %v1054 = vld [vmem:[#allocation2] sm:$0xf]
          %v1059 = vunpack.c.l.b16 %v472
          %v1060 = vunpack.c.l.b16 %v473
          %v1061 = vunpack.c.l.b16 %v474
          %v1062 = vunpack.c.l.b16 %v475
          %v1063 = vpack.c.b16 %v1060, %v1059
          %v1064 = vpack.c.b16 %v1062, %v1061
          %v1068 = vsel %vm484, %v1054, 0
          %1070 = vmatprep.subr.bf16.mxu0 0
          %1071 = vmatpush1.bf16.msra.mxu0 %v1063
          %1072 = vmatprep.subr.bf16.mxu0 0
          %1073 = vmatpush1.bf16.msra.mxu0 %v1064
          %1074 = vmatprep.subr.bf16.mxu0 0
          %1075 = vmatpush1.bf16.msra.mxu0 0
          %1076 = vmatprep.subr.bf16.mxu0 0
          %1077 = vmatpush1.bf16.msra.mxu0 0
          %1078 = vmatprep.subr.bf16.mxu0 0
          %1079 = vmatpush1.bf16.msra.mxu0 0
          %1080 = vmatprep.subr.bf16.mxu0 0
          %1081 = vmatpush1.bf16.msra.mxu0 0
          %1082 = vmatprep.subr.bf16.mxu0 0
          %1083 = vmatpush1.bf16.msra.mxu0 0
          %1084 = vmatprep.subr.bf16.mxu0 0
          %1085 = vmatpush1.bf16.msra.mxu0 0
          %1086 = vmatprep.subr.bf16.mxu0 0
          %1087 = vmatpush1.bf16.msra.mxu0 0
          %1088 = vmatprep.subr.bf16.mxu0 0
          %1089 = vmatpush1.bf16.msra.mxu0 0
          %1090 = vmatprep.subr.bf16.mxu0 0
          %1091 = vmatpush1.bf16.msra.mxu0 0
          %1092 = vmatprep.subr.bf16.mxu0 0
          %1093 = vmatpush1.bf16.msra.mxu0 0
          %1094 = vmatprep.subr.bf16.mxu0 0
          %1095 = vmatpush1.bf16.msra.mxu0 0
          %1096 = vmatprep.subr.bf16.mxu0 0
          %1097 = vmatpush1.bf16.msra.mxu0 0
          %1098 = vmatprep.subr.bf16.mxu0 0
          %1099 = vmatpush1.bf16.msra.mxu0 0
          %1100 = vmatprep.subr.bf16.mxu0 0
          %1101 = vmatpush1.bf16.msra.mxu0 0
          %1102 = vmatprep.mubr.bf16.mxu0 0
          %1103 = vmatmul.mubr.bf16.gmra.mrb[0].mxu0 %v1068
          %v1104 = vpop.f32.mrb[0].mxu0
          %v1105 = vadd.f32 0.0, %v1104
          %v1106 = vpop.f32.mrb[0].mxu0
          %v1107 = vpop.f32.mrb[0].mxu0
          %v1108 = vpop.f32.mrb[0].mxu0
          %1109 = vdwg.mxu0
          %v1110 = vadd.f32 %v483, %v1105
          %v1112 = vlaneseq
          %v1113 = vshrl.u32 %v1112, 7
          %v1114 = vsub.s32 0, %v1113
          %v1115 = vrot.slane %v476, %v1114
          %v1117 = vadd.f32 %v1110, %v1115
        $region81: #{tpu_custom_call.1} parent=75 // loop_footer
          %s482 = sadd.s32 1, %s478
        $region82: #{tpu_custom_call.1} parent=75 // loop_footer_branch
          %477 = sbr.rel target = $region78
        $region83: #{tpu_custom_call.1} parent=75 // loop_exit
          _
        %v1118 = vld [vmem:[%s4] sm:$0x1]
        %v1119 = vld [vmem:[%s5] sm:$0x1]
        %vm1120 = vcmask 261120
        %v1121 = vsel %vm1120, %v483, 0.0
        %1122 = vadd.xlane.f32.xlu0 %v1121
        %v1123 = vpop.xlane.xlu0 %1122
        %v1124 = vrcp.pop 32.0
        %v1125 = vmul.f32 %v1123, %v1124
        %v1126 = vsub.f32 %v483, %v1125
        %v1127 = vmul.f32 %v1126, %v1126
        %v1128 = vsel %vm1120, %v1127, 0.0
        %1129 = vadd.xlane.f32.xlu0 %v1128
        %v1130 = vpop.xlane.xlu0 %1129
        %v1131 = vmul.f32 %v1130, %v1124
        %v1132 = vadd.f32 %v1131, 1e-05
        %v1133 = vrsqrt.pop %v1132
        %v1134 = vmul.f32 %v1126, %v1133
        %v1136 = vlaneseq
        %v1137 = vshrl.u32 %v1136, 7
        %v1138 = vsub.s32 0, %v1137
        %v1139 = vrot.slane %v1118, %v1138
        %v1141 = vmul.f32 %v1134, %v1139
        %v1143 = vlaneseq
        %v1144 = vshrl.u32 %v1143, 7
        %v1145 = vsub.s32 0, %v1144
        %v1146 = vrot.slane %v1119, %v1145
        %v1148 = vadd.f32 %v1141, %v1146
        %v1149 = vpack.c.bf16 %v1148, %v1148
        %v1150 = vld [vmem:[%s10] sm:$0xf]
        %v1151 = vld [vmem:[%s10 + $0x4] sm:$0xf]
        %v1152 = vld [vmem:[%s10 + $0x8] sm:$0xf]
        %v1153 = vld [vmem:[%s10 + $0xc] sm:$0xf]
        %v1154 = vld [vmem:[%s11] sm:$0x1]
        %v1156 = vlaneseq
        %v1157 = vshrl.u32 %v1156, 7
        %v1158 = vsub.s32 0, %v1157
        %v1159 = vrot.slane %v1154, %v1158
        %v1165 = vunpack.c.l.b16 %v1150
        %v1166 = vunpack.c.l.b16 %v1151
        %v1167 = vunpack.c.l.b16 %v1152
        %v1168 = vunpack.c.l.b16 %v1153
        %v1169 = vpack.c.b16 %v1166, %v1165
        %v1170 = vpack.c.b16 %v1168, %v1167
        %v1174 = vsel %vm1120, %v1149, 0
        %1176 = vmatprep.subr.bf16.mxu0 0
        %1177 = vmatpush1.bf16.msra.mxu0 %v1169
        %1178 = vmatprep.subr.bf16.mxu0 0
        %1179 = vmatpush1.bf16.msra.mxu0 %v1170
        %1180 = vmatprep.subr.bf16.mxu0 0
        %1181 = vmatpush1.bf16.msra.mxu0 0
        %1182 = vmatprep.subr.bf16.mxu0 0
        %1183 = vmatpush1.bf16.msra.mxu0 0
        %1184 = vmatprep.subr.bf16.mxu0 0
        %1185 = vmatpush1.bf16.msra.mxu0 0
        %1186 = vmatprep.subr.bf16.mxu0 0
        %1187 = vmatpush1.bf16.msra.mxu0 0
        %1188 = vmatprep.subr.bf16.mxu0 0
        %1189 = vmatpush1.bf16.msra.mxu0 0
        %1190 = vmatprep.subr.bf16.mxu0 0
        %1191 = vmatpush1.bf16.msra.mxu0 0
        %1192 = vmatprep.subr.bf16.mxu0 0
        %1193 = vmatpush1.bf16.msra.mxu0 0
        %1194 = vmatprep.subr.bf16.mxu0 0
        %1195 = vmatpush1.bf16.msra.mxu0 0
        %1196 = vmatprep.subr.bf16.mxu0 0
        %1197 = vmatpush1.bf16.msra.mxu0 0
        %1198 = vmatprep.subr.bf16.mxu0 0
        %1199 = vmatpush1.bf16.msra.mxu0 0
        %1200 = vmatprep.subr.bf16.mxu0 0
        %1201 = vmatpush1.bf16.msra.mxu0 0
        %1202 = vmatprep.subr.bf16.mxu0 0
        %1203 = vmatpush1.bf16.msra.mxu0 0
        %1204 = vmatprep.subr.bf16.mxu0 0
        %1205 = vmatpush1.bf16.msra.mxu0 0
        %1206 = vmatprep.subr.bf16.mxu0 0
        %1207 = vmatpush1.bf16.msra.mxu0 0
        %1208 = vmatprep.mubr.bf16.mxu0 0
        %1209 = vmatmul.mubr.bf16.gmra.mrb[0].mxu0 %v1174
        %v1210 = vpop.f32.mrb[0].mxu0
        %v1211 = vadd.f32 %v1159, %v1210
        %v1212 = vpop.f32.mrb[0].mxu0
        %v1213 = vpop.f32.mrb[0].mxu0
        %v1214 = vpop.f32.mrb[0].mxu0
        %1215 = vdwg.mxu0
        %v1216 = vmul.f32 %v1211, 0.5
        %v1217 = vmul.f32 %v1211, %v1211
        %v1218 = vmul.f32 %v1217, %v1211
        %v1219 = vmul.f32 %v1218, 0.044715
        %v1220 = vadd.f32 %v1211, %v1219
        %v1221 = vmul.f32 %v1220, 0.7978846
        %v1222 = vtanh.pop %v1221
        %v1223 = vadd.f32 %v1222, 1.0
        %v1224 = vmul.f32 %v1216, %v1223
        %v1225 = vpack.c.bf16 %v1224, %v1224
        %v1226 = vld [vmem:[%s12] sm:$0xf]
        %v1227 = vld [vmem:[%s12 + $0x4] sm:$0xf]
        %v1228 = vld [vmem:[%s12 + $0x8] sm:$0xf]
        %v1229 = vld [vmem:[%s12 + $0xc] sm:$0xf]
        %v1230 = vld [vmem:[%s12 + $0x10] sm:$0xf]
        %v1231 = vld [vmem:[%s12 + $0x14] sm:$0xf]
        %v1232 = vld [vmem:[%s12 + $0x18] sm:$0xf]
        %v1233 = vld [vmem:[%s12 + $0x1c] sm:$0xf]
        %v1234 = vld [vmem:[%s12 + $0x20] sm:$0xf]
        %v1235 = vld [vmem:[%s12 + $0x24] sm:$0xf]
        %v1236 = vld [vmem:[%s12 + $0x28] sm:$0xf]
        %v1237 = vld [vmem:[%s12 + $0x2c] sm:$0xf]
        %v1238 = vld [vmem:[%s12 + $0x30] sm:$0xf]
        %v1239 = vld [vmem:[%s12 + $0x34] sm:$0xf]
        %v1240 = vld [vmem:[%s12 + $0x38] sm:$0xf]
        %v1241 = vld [vmem:[%s12 + $0x3c] sm:$0xf]
        %v1242 = vld [vmem:[%s13] sm:$0x1]
        %v1244 = vlaneseq
        %v1245 = vshrl.u32 %v1244, 7
        %v1246 = vsub.s32 0, %v1245
        %v1247 = vrot.slane %v1242, %v1246
        %v1265 = vunpack.c.l.b16 %v1226
        %v1266 = vunpack.c.l.b16 %v1227
        %v1267 = vunpack.c.l.b16 %v1228
        %v1268 = vunpack.c.l.b16 %v1229
        %v1269 = vunpack.c.l.b16 %v1230
        %v1270 = vunpack.c.l.b16 %v1231
        %v1271 = vunpack.c.l.b16 %v1232
        %v1272 = vunpack.c.l.b16 %v1233
        %v1273 = vunpack.c.l.b16 %v1234
        %v1274 = vunpack.c.l.b16 %v1235
        %v1275 = vunpack.c.l.b16 %v1236
        %v1276 = vunpack.c.l.b16 %v1237
        %v1277 = vunpack.c.l.b16 %v1238
        %v1278 = vunpack.c.l.b16 %v1239
        %v1279 = vunpack.c.l.b16 %v1240
        %v1280 = vunpack.c.l.b16 %v1241
        %v1281 = vpack.c.b16 %v1266, %v1265
        %v1282 = vpack.c.b16 %v1268, %v1267
        %v1283 = vpack.c.b16 %v1270, %v1269
        %v1284 = vpack.c.b16 %v1272, %v1271
        %v1285 = vpack.c.b16 %v1274, %v1273
        %v1286 = vpack.c.b16 %v1276, %v1275
        %v1287 = vpack.c.b16 %v1278, %v1277
        %v1288 = vpack.c.b16 %v1280, %v1279
        %1297 = vmatprep.subr.bf16.mxu0 0
        %1298 = vmatpush1.bf16.msra.mxu0 %v1281
        %1299 = vmatprep.subr.bf16.mxu0 0
        %1300 = vmatpush1.bf16.msra.mxu0 %v1282
        %1301 = vmatprep.subr.bf16.mxu0 0
        %1302 = vmatpush1.bf16.msra.mxu0 %v1283
        %1303 = vmatprep.subr.bf16.mxu0 0
        %1304 = vmatpush1.bf16.msra.mxu0 %v1284
        %1305 = vmatprep.subr.bf16.mxu0 0
        %1306 = vmatpush1.bf16.msra.mxu0 %v1285
        %1307 = vmatprep.subr.bf16.mxu0 0
        %1308 = vmatpush1.bf16.msra.mxu0 %v1286
        %1309 = vmatprep.subr.bf16.mxu0 0
        %1310 = vmatpush1.bf16.msra.mxu0 %v1287
        %1311 = vmatprep.subr.bf16.mxu0 0
        %1312 = vmatpush1.bf16.msra.mxu0 %v1288
        %1313 = vmatprep.subr.bf16.mxu0 0
        %1314 = vmatpush1.bf16.msra.mxu0 0
        %1315 = vmatprep.subr.bf16.mxu0 0
        %1316 = vmatpush1.bf16.msra.mxu0 0
        %1317 = vmatprep.subr.bf16.mxu0 0
        %1318 = vmatpush1.bf16.msra.mxu0 0
        %1319 = vmatprep.subr.bf16.mxu0 0
        %1320 = vmatpush1.bf16.msra.mxu0 0
        %1321 = vmatprep.subr.bf16.mxu0 0
        %1322 = vmatpush1.bf16.msra.mxu0 0
        %1323 = vmatprep.subr.bf16.mxu0 0
        %1324 = vmatpush1.bf16.msra.mxu0 0
        %1325 = vmatprep.subr.bf16.mxu0 0
        %1326 = vmatpush1.bf16.msra.mxu0 0
        %1327 = vmatprep.subr.bf16.mxu0 0
        %1328 = vmatpush1.bf16.msra.mxu0 0
        %1329 = vmatprep.mubr.bf16.mxu0 0
        %1330 = vmatmul.mubr.bf16.gmra.mrb[0].mxu0 %v1225
        %v1331 = vpop.f32.mrb[0].mxu0
        %v1332 = vadd.f32 %v1247, %v1331
        %v1333 = vpop.f32.mrb[0].mxu0
        %v1334 = vpop.f32.mrb[0].mxu0
        %v1335 = vpop.f32.mrb[0].mxu0
        %1336 = vdwg.mxu0
        %v1337 = vadd.f32 %v483, %v1332
        %1338 = vst.msk [vmem:[%s458] sm:$0xff] %vm1120, %v1337
        %s1339 = sand.u32 %s335, 1
        %s1340 = scalar_lea.sflag [#allocation4], %s1339
        %s1341 = sand.u32 %s335, 1
        %s1342 = smul.addr %s1341, 8
        %s1343 = scalar_lea.vmem [#allocation3], %s1342
        // Predicated region
        $region84: #{tpu_custom_call.1} parent=75 // pred_check
          %p1344 = pneg %p345
        $region85: #{tpu_custom_call.1} parent=75 // pred_check_branch
          %1346 = sbr.rel (%p1344) target = $region87
        $region86: #{tpu_custom_call.1} parent=75 // pred_region
          %s1348 = ssub.s32 128, 128
          %1349 = vsyncadd %s1340, %s1348
          %s1350 = smul.addr %s28, 128
          %s1351 = scalar_lea.hbm %s14, %s1350
          %s1353 = sshll.u32 %s1343, 4
          %s1354 = int_to_ptr.vmem [resolvable:$true] %s1353
          %1356 = dma.vmem_to_hbm [thread:$0]  %s1354, 128, %s1351, %s1340
        $region87: #{tpu_custom_call.1} parent=75 // pred_fallthru
          _
      $region76: #{tpu_custom_call.1} parent=5 // pred_fallthru
        _
      %p1357 = scmp.le.s32.totalorder 2, %s23
      // Predicated region
      $region88: #{tpu_custom_call.1} parent=5 // pred_check
        %p1358 = pneg %p1357
      $region89: #{tpu_custom_call.1} parent=5 // pred_check_branch
        %1360 = sbr.rel (%p1358) target = $region91
      $region90: #{tpu_custom_call.1} parent=5 // pred_region
        %s1361 = ssub.s32 %s23, 2
        // Predicated region
        $region92: #{tpu_custom_call.1} parent=90 // pred_check
          %p1362 = pneg %p351
        $region93: #{tpu_custom_call.1} parent=90 // pred_check_branch
          %1364 = sbr.rel (%p1362) target = $region95
        $region94: #{tpu_custom_call.1} parent=90 // pred_region
          %s1365 = sand.u32 %s336, 1
          %s1366 = scalar_lea.sflag [#allocation4], %s1365
          %s1367 = sand.u32 %s336, 1
          %s1368 = smul.addr %s1367, 8
          %s1369 = scalar_lea.vmem [#allocation3], %s1368
          %1370 = dma.done %s1366, 128
        $region95: #{tpu_custom_call.1} parent=90 // pred_fallthru
          _
      $region91: #{tpu_custom_call.1} parent=5 // pred_fallthru
        _
    $region6: #{tpu_custom_call.1} parent=1 // loop_footer
      %s27 = sadd.s32 1, %s23
    $region7: #{tpu_custom_call.1} parent=1 // loop_footer_branch
      %22 = sbr.rel target = $region3
    $region8: #{tpu_custom_call.1} parent=1 // loop_exit
      _
    %1371 = vsyncpa [#allocation4], 1
    %s1372 = scalar_lea.sflag [#allocation4], 1
    %1373 = vsyncpa %s1372, 1

</llo_original>
